<compile_context>
chip_gen: v5e
topology: v5e:2x2
jax: 0.10.0
libtpu: 0.0.40
codegen_flags: <defaults>
</compile_context>

<pallas_src>
import math
import functools

import numpy as np
import jax
import jax.numpy as jnp
from jax.experimental import pallas as pl
from jax.experimental.pallas import tpu as pltpu


def _layernorm(h, w, b, eps=1e-5):
    mu = jnp.mean(h, axis=-1, keepdims=True)
    var = jnp.mean((h - mu) ** 2, axis=-1, keepdims=True)
    return (h - mu) * jax.lax.rsqrt(var + eps) * w + b


def _gelu_exact(x):
    # torch.nn.GELU() default: exact erf formulation.
    return 0.5 * x * (1.0 + jax.lax.erf(x * (1.0 / math.sqrt(2.0))))


def block_kernel(n_head, matmul_dtype,
                 x_ref, mask_ref,
                 ln1w_ref, ln1b_ref,
                 wqkv_ref, bqkv_ref,
                 wp_ref, bp_ref,
                 ln2w_ref, ln2b_ref,
                 w1_ref, b1_ref, w2_ref, b2_ref,
                 out_ref,
                 qh_ref, kh_ref, vh_ref, ycat_ref):
    # One grid step == one batch element.
    x = x_ref[0]                              # (T, C) f32
    T, C = x.shape
    hd = C // n_head

    # ---- ln1 (f32 elementwise) ----
    h = _layernorm(x, ln1w_ref[...], ln1b_ref[...])

    # ---- fused QKV projection: single (T, C) @ (C, 3C) MXU matmul ----
    # 1/sqrt(hd) is pre-folded into the Q columns / Q bias by the wrapper.
    qkv = jnp.dot(h.astype(matmul_dtype), wqkv_ref[...],
                  preferred_element_type=jnp.float32) + bqkv_ref[...]   # (T, 3C)

    # ---- split heads into (n_head, T, hd) scratch: layout only, no compute ----
    for i in range(n_head):
        qh_ref[i] = qkv[:, i * hd:(i + 1) * hd]
        kh_ref[i] = qkv[:, C + i * hd:C + (i + 1) * hd]
        vh_ref[i] = qkv[:, 2 * C + i * hd:2 * C + (i + 1) * hd]
    qh = qh_ref[...].astype(matmul_dtype)
    kh = kh_ref[...].astype(matmul_dtype)
    vh = vh_ref[...].astype(matmul_dtype)

    # ---- per-(batch, head) causal attention on (T, T) logits ----
    att = jnp.einsum('htd,hsd->hts', qh, kh,
                     preferred_element_type=jnp.float32)     # (n_head, T, T)
    att = att + mask_ref[...][None, :, :]                    # additive -1e30 bias
    att = att - jnp.max(att, axis=-1, keepdims=True)
    p = jnp.exp(att)
    # approx=True would move this to the EUP; kept exact for 1e-4 parity.
    p = p * pl.reciprocal(jnp.sum(p, axis=-1, keepdims=True), approx=False)
    y = jnp.einsum('hts,hsd->htd', p.astype(matmul_dtype), vh,
                   preferred_element_type=jnp.float32)       # (n_head, T, hd)

    # ---- merge heads (layout only) + ONE (T, C) @ (C, C) output projection ----
    for i in range(n_head):
        ycat_ref[:, i * hd:(i + 1) * hd] = y[i]
    y_cat = ycat_ref[...]
    x1 = x + jnp.dot(y_cat.astype(matmul_dtype), wp_ref[...],
                     preferred_element_type=jnp.float32) + bp_ref[...]

    # ---- ln2 + MLP (fc -> exact GELU -> proj) + residual ----
    h2 = _layernorm(x1, ln2w_ref[...], ln2b_ref[...])
    m = jnp.dot(h2.astype(matmul_dtype), w1_ref[...],
                preferred_element_type=jnp.float32) + b1_ref[...]
    m = _gelu_exact(m)
    m = jnp.dot(m.astype(matmul_dtype), w2_ref[...],
                preferred_element_type=jnp.float32) + b2_ref[...]

    out_ref[0] = x1 + m


def gpt_block_pallas(x, params, n_head, use_bf16_matmul=False):
    B, T, C = x.shape
    assert C % n_head == 0
    hd = C // n_head
    scale = 1.0 / math.sqrt(hd)

    matmul_dtype = jnp.bfloat16 if use_bf16_matmul else jnp.float32

    def cast_w(w):
        return w.astype(matmul_dtype)

    # Wrapper-side layout plumbing (plain XLA, free):
    #   fused QKV weight (C, 3C) with 1/sqrt(hd) folded into the Q block.
    wqkv = jnp.concatenate([params["wq"] * scale, params["wk"], params["wv"]], axis=1)
    bqkv = jnp.concatenate([params["bq"] * scale, params["bk"], params["bv"]], axis=1)

    # Precomputed additive causal-mask bias (large finite negative, not -inf).
    rows = jnp.arange(T)[:, None]
    cols = jnp.arange(T)[None, :]
    mask_bias = jnp.where(rows >= cols, 0.0, -1e30).astype(jnp.float32)

    kparams = {
        "mask": mask_bias,
        "ln1_w": params["ln1_w"], "ln1_b": params["ln1_b"],
        "wqkv": cast_w(wqkv), "bqkv": bqkv,
        "wp": cast_w(params["wp"]), "bp": params["bp"],
        "ln2_w": params["ln2_w"], "ln2_b": params["ln2_b"],
        "w1": cast_w(params["w1"]), "b1": params["b1"],
        "w2": cast_w(params["w2"]), "b2": params["b2"],
    }
    param_order = ["mask", "ln1_w", "ln1_b", "wqkv", "bqkv", "wp", "bp",
                   "ln2_w", "ln2_b", "w1", "b1", "w2", "b2"]
    param_arrays = [kparams[name] for name in param_order]

    def full_spec(shape):
        zeros = (0,) * len(shape)
        return pl.BlockSpec(shape, lambda i, _z=zeros: _z)

    param_specs = [full_spec(a.shape) for a in param_arrays]

    scratch_shapes = [
        pltpu.VMEM((n_head, T, hd), jnp.float32),   # q heads
        pltpu.VMEM((n_head, T, hd), jnp.float32),   # k heads
        pltpu.VMEM((n_head, T, hd), jnp.float32),   # v heads
        pltpu.VMEM((T, C), jnp.float32),            # merged attention output
    ]

    # Explicitly raise the scoped-VMEM limit once the resident footprint would
    # trip the smallest default (v5e: 16 MiB); clamp under v7x's 64 MiB.
    param_bytes = sum(int(a.size) * a.dtype.itemsize for a in param_arrays)
    act_bytes = 4 * (T * 3 * C + 3 * n_head * T * hd + 2 * n_head * T * T
                     + 4 * T * C + 2 * T * 4 * C)
    io_bytes = 2 * 2 * 4 * T * C                    # double-buffered x / out blocks
    est_bytes = 2 * param_bytes + act_bytes + io_bytes + (1 << 20)
    vmem_limit_bytes = None
    if est_bytes > (16 << 20):
        vmem_limit_bytes = int(min(est_bytes, 60 << 20))

    # Advisory cost estimate so XLA can schedule around the custom call.
    flops = int(24 * B * T * C * C + 4 * B * T * T * C)
    transcendentals = int(B * n_head * T * T + B * T * 4 * C)
    bytes_accessed = int(8 * B * T * C + param_bytes)

    out = pl.pallas_call(
        functools.partial(block_kernel, n_head, matmul_dtype),
        out_shape=jax.ShapeDtypeStruct((B, T, C), jnp.float32),
        grid=(B,),
        in_specs=[pl.BlockSpec((1, T, C), lambda i: (i, 0, 0))] + param_specs,
        out_specs=pl.BlockSpec((1, T, C), lambda i: (i, 0, 0)),
        scratch_shapes=scratch_shapes,
        compiler_params=pltpu.CompilerParams(
            dimension_semantics=("parallel",),
            vmem_limit_bytes=vmem_limit_bytes),
        cost_estimate=pl.CostEstimate(
            flops=flops,
            transcendentals=transcendentals,
            bytes_accessed=bytes_accessed),
    )(x, *param_arrays)
    return out


# ---------------- pure-JAX reference (mirrors the PyTorch forward) -----------
def gpt_block_ref(x, params, n_head):
    B, T, C = x.shape
    hd = C // n_head

    def ln(h, w, b):
        mu = h.mean(-1, keepdims=True)
        var = ((h - mu) ** 2).mean(-1, keepdims=True)
        return (h - mu) / jnp.sqrt(var + 1e-5) * w + b

    h = ln(x, params["ln1_w"], params["ln1_b"])
    q = h @ params["wq"] + params["bq"]
    k = h @ params["wk"] + params["bk"]
    v = h @ params["wv"] + params["bv"]
    q = q.reshape(B, T, n_head, hd).transpose(0, 2, 1, 3)
    k = k.reshape(B, T, n_head, hd).transpose(0, 2, 1, 3)
    v = v.reshape(B, T, n_head, hd).transpose(0, 2, 1, 3)
    att = (q @ k.transpose(0, 1, 3, 2)) / math.sqrt(hd)
    mask = jnp.tril(jnp.ones((T, T)))[None, None]
    att = jnp.where(mask == 0, -jnp.inf, att)
    att = jax.nn.softmax(att, axis=-1)
    y = (att @ v).transpose(0, 2, 1, 3).reshape(B, T, C)
    y = y @ params["wp"] + params["bp"]
    x1 = x + y
    h2 = ln(x1, params["ln2_w"], params["ln2_b"])
    m = h2 @ params["w1"] + params["b1"]
    m = 0.5 * m * (1.0 + jax.lax.erf(m / jnp.sqrt(2.0)))
    m = m @ params["w2"] + params["b2"]
    return x1 + m


def make_params(key, n_embd):
    keys = jax.random.split(key, 8)
    C = n_embd
    p = {}
    p["ln1_w"] = jnp.ones((1, C), jnp.float32)
    p["ln1_b"] = jnp.zeros((1, C), jnp.float32)
    p["ln2_w"] = jnp.ones((1, C), jnp.float32)
    p["ln2_b"] = jnp.zeros((1, C), jnp.float32)
    # Linear weights stored (in, out) == torch weight.T ; biases as (1, out).
    p["wq"] = 0.02 * jax.random.normal(keys[0], (C, C), jnp.float32)
    p["bq"] = jnp.zeros((1, C), jnp.float32)
    p["wk"] = 0.02 * jax.random.normal(keys[1], (C, C), jnp.float32)
    p["bk"] = jnp.zeros((1, C), jnp.float32)
    p["wv"] = 0.02 * jax.random.normal(keys[2], (C, C), jnp.float32)
    p["bv"] = jnp.zeros((1, C), jnp.float32)
    p["wp"] = 0.02 * jax.random.normal(keys[3], (C, C), jnp.float32)
    p["bp"] = jnp.zeros((1, C), jnp.float32)
    p["w1"] = 0.02 * jax.random.normal(keys[4], (C, 4 * C), jnp.float32)
    p["b1"] = 0.02 * jax.random.normal(keys[5], (1, 4 * C), jnp.float32)
    p["w2"] = 0.02 * jax.random.normal(keys[6], (4 * C, C), jnp.float32)
    p["b2"] = 0.02 * jax.random.normal(keys[7], (1, C), jnp.float32)
    return p


if __name__ == "__main__":
    # config: n_embd=32, n_head=4, block_size=8 (T == block_size)
    B, T, C, n_head = 2, 8, 32, 4
    key = jax.random.PRNGKey(0)
    kx, kp = jax.random.split(key)
    x = jax.random.normal(kx, (B, T, C), jnp.float32)
    params = make_params(kp, C)

    out = gpt_block_pallas(x, params, n_head)
    out = jax.block_until_ready(out)

    ref = gpt_block_ref(x, params, n_head)
    np.testing.assert_allclose(np.asarray(out), np.asarray(ref),
                               rtol=1e-4, atol=1e-4)
    print("KERNEL_OK")
</pallas_src>

<mosaic_0001>
module attributes {stable_mosaic.version = 11 : i64} {
  func.func @block_kernel(%arg0: i32, %arg1: memref<1x8x32xf32, #tpu.memory_space<vmem>>, %arg2: memref<8x8xf32, #tpu.memory_space<vmem>>, %arg3: memref<1x32xf32, #tpu.memory_space<vmem>>, %arg4: memref<1x32xf32, #tpu.memory_space<vmem>>, %arg5: memref<32x96xf32, #tpu.memory_space<vmem>>, %arg6: memref<1x96xf32, #tpu.memory_space<vmem>>, %arg7: memref<32x32xf32, #tpu.memory_space<vmem>>, %arg8: memref<1x32xf32, #tpu.memory_space<vmem>>, %arg9: memref<1x32xf32, #tpu.memory_space<vmem>>, %arg10: memref<1x32xf32, #tpu.memory_space<vmem>>, %arg11: memref<32x128xf32, #tpu.memory_space<vmem>>, %arg12: memref<1x128xf32, #tpu.memory_space<vmem>>, %arg13: memref<128x32xf32, #tpu.memory_space<vmem>>, %arg14: memref<1x32xf32, #tpu.memory_space<vmem>>, %arg15: memref<1x8x32xf32, #tpu.memory_space<vmem>>, %arg16: memref<4x8x8xf32, #tpu.memory_space<vmem>>, %arg17: memref<4x8x8xf32, #tpu.memory_space<vmem>>, %arg18: memref<4x8x8xf32, #tpu.memory_space<vmem>>, %arg19: memref<8x32xf32, #tpu.memory_space<vmem>>) attributes {dimension_semantics = [#tpu.dimension_semantics<parallel>], iteration_bounds = array<i64: 2>, scalar_prefetch = 0 : i64, scratch_operands = 4 : i64, tpu.core_type = #tpu.core_type<tc>, window_params = [{transform_indices = @transform_0, window_bounds = array<i64: 1, 8, 32>}, {pipeline_mode = #tpu.pipeline_mode<synchronous>, transform_indices = @transform_1, window_bounds = array<i64: 8, 8>}, {pipeline_mode = #tpu.pipeline_mode<synchronous>, transform_indices = @transform_2, window_bounds = array<i64: 1, 32>}, {pipeline_mode = #tpu.pipeline_mode<synchronous>, transform_indices = @transform_3, window_bounds = array<i64: 1, 32>}, {pipeline_mode = #tpu.pipeline_mode<synchronous>, transform_indices = @transform_4, window_bounds = array<i64: 32, 96>}, {pipeline_mode = #tpu.pipeline_mode<synchronous>, transform_indices = @transform_5, window_bounds = array<i64: 1, 96>}, {pipeline_mode = #tpu.pipeline_mode<synchronous>, transform_indices = @transform_6, window_bounds = array<i64: 32, 32>}, {pipeline_mode = #tpu.pipeline_mode<synchronous>, transform_indices = @transform_7, window_bounds = array<i64: 1, 32>}, {pipeline_mode = #tpu.pipeline_mode<synchronous>, transform_indices = @transform_8, window_bounds = array<i64: 1, 32>}, {pipeline_mode = #tpu.pipeline_mode<synchronous>, transform_indices = @transform_9, window_bounds = array<i64: 1, 32>}, {pipeline_mode = #tpu.pipeline_mode<synchronous>, transform_indices = @transform_10, window_bounds = array<i64: 32, 128>}, {pipeline_mode = #tpu.pipeline_mode<synchronous>, transform_indices = @transform_11, window_bounds = array<i64: 1, 128>}, {pipeline_mode = #tpu.pipeline_mode<synchronous>, transform_indices = @transform_12, window_bounds = array<i64: 128, 32>}, {pipeline_mode = #tpu.pipeline_mode<synchronous>, transform_indices = @transform_13, window_bounds = array<i64: 1, 32>}, {transform_indices = @transform_14, window_bounds = array<i64: 1, 8, 32>}]} {
    %c0 = arith.constant 0 : index
    %c0_0 = arith.constant 0 : index
    %c0_1 = arith.constant 0 : index
    %0 = vector.load %arg1[%c0, %c0_0, %c0_1] : memref<1x8x32xf32, #tpu.memory_space<vmem>>, vector<1x8x32xf32>
    %1 = vector.shape_cast %0 : vector<1x8x32xf32> to vector<8x32xf32>
    %c0_2 = arith.constant 0 : index
    %c0_3 = arith.constant 0 : index
    %2 = vector.load %arg3[%c0_2, %c0_3] : memref<1x32xf32, #tpu.memory_space<vmem>>, vector<1x32xf32>
    %c0_4 = arith.constant 0 : index
    %c0_5 = arith.constant 0 : index
    %3 = vector.load %arg4[%c0_4, %c0_5] : memref<1x32xf32, #tpu.memory_space<vmem>>, vector<1x32xf32>
    %cst = arith.constant dense<0.000000e+00> : vector<8xf32>
    %4 = vector.multi_reduction <add>, %1, %cst [1] : vector<8x32xf32> to vector<8xf32>
    %5 = vector.shape_cast %4 : vector<8xf32> to vector<8x1xf32>
    %cst_6 = arith.constant 3.200000e+01 : f32
    %6 = vector.broadcast %cst_6 : f32 to vector<8x1xf32>
    %7 = arith.divf %5, %6 : vector<8x1xf32>
    %8 = vector.broadcast %7 : vector<8x1xf32> to vector<8x32xf32>
    %9 = arith.subf %1, %8 : vector<8x32xf32>
    %10 = arith.mulf %9, %9 : vector<8x32xf32>
    %cst_7 = arith.constant dense<0.000000e+00> : vector<8xf32>
    %11 = vector.multi_reduction <add>, %10, %cst_7 [1] : vector<8x32xf32> to vector<8xf32>
    %12 = vector.shape_cast %11 : vector<8xf32> to vector<8x1xf32>
    %cst_8 = arith.constant 3.200000e+01 : f32
    %13 = vector.broadcast %cst_8 : f32 to vector<8x1xf32>
    %14 = arith.divf %12, %13 : vector<8x1xf32>
    %15 = vector.broadcast %7 : vector<8x1xf32> to vector<8x32xf32>
    %16 = arith.subf %1, %15 : vector<8x32xf32>
    %cst_9 = arith.constant 9.99999974E-6 : f32
    %17 = vector.broadcast %cst_9 : f32 to vector<8x1xf32>
    %18 = arith.addf %14, %17 : vector<8x1xf32>
    %19 = math.rsqrt %18 : vector<8x1xf32>
    %20 = vector.broadcast %19 : vector<8x1xf32> to vector<8x32xf32>
    %21 = arith.mulf %16, %20 : vector<8x32xf32>
    %22 = vector.broadcast %2 : vector<1x32xf32> to vector<8x32xf32>
    %23 = arith.mulf %21, %22 : vector<8x32xf32>
    %24 = vector.broadcast %3 : vector<1x32xf32> to vector<8x32xf32>
    %25 = arith.addf %23, %24 : vector<8x32xf32>
    %c0_10 = arith.constant 0 : index
    %c0_11 = arith.constant 0 : index
    %26 = vector.load %arg5[%c0_10, %c0_11] : memref<32x96xf32, #tpu.memory_space<vmem>>, vector<32x96xf32>
    %cst_12 = arith.constant dense<0.000000e+00> : vector<8x96xf32>
    %27 = tpu.matmul %25, %26, %cst_12 {dimension_numbers = #tpu.dot_dimension_numbers<[1], [0], [0], [1], [0, 0, 1, 1], [], []>} : vector<8x32xf32>, vector<32x96xf32>, vector<8x96xf32> -> vector<8x96xf32>
    %c0_13 = arith.constant 0 : index
    %c0_14 = arith.constant 0 : index
    %28 = vector.load %arg6[%c0_13, %c0_14] : memref<1x96xf32, #tpu.memory_space<vmem>>, vector<1x96xf32>
    %29 = vector.broadcast %28 : vector<1x96xf32> to vector<8x96xf32>
    %30 = arith.addf %27, %29 : vector<8x96xf32>
    %31 = vector.extract_strided_slice %30 {offsets = [0, 0], sizes = [8, 8], strides = [1, 1]} : vector<8x96xf32> to vector<8x8xf32>
    %c0_15 = arith.constant 0 : index
    %c0_16 = arith.constant 0 : index
    %c0_17 = arith.constant 0 : index
    %32 = vector.load %arg16[%c0_15, %c0_16, %c0_17] : memref<4x8x8xf32, #tpu.memory_space<vmem>>, vector<1x8x8xf32>
    %33 = vector.shape_cast %32 : vector<1x8x8xf32> to vector<8x8xf32>
    %34 = vector.shape_cast %31 : vector<8x8xf32> to vector<1x8x8xf32>
    tpu.vector_store %arg16[%c0_15, %c0_16, %c0_17], %34 {strides = array<i32>} : memref<4x8x8xf32, #tpu.memory_space<vmem>>, vector<1x8x8xf32>,
    %35 = vector.extract_strided_slice %30 {offsets = [0, 32], sizes = [8, 8], strides = [1, 1]} : vector<8x96xf32> to vector<8x8xf32>
    %c0_18 = arith.constant 0 : index
    %c0_19 = arith.constant 0 : index
    %c0_20 = arith.constant 0 : index
    %36 = vector.load %arg17[%c0_18, %c0_19, %c0_20] : memref<4x8x8xf32, #tpu.memory_space<vmem>>, vector<1x8x8xf32>
    %37 = vector.shape_cast %36 : vector<1x8x8xf32> to vector<8x8xf32>
    %38 = vector.shape_cast %35 : vector<8x8xf32> to vector<1x8x8xf32>
    tpu.vector_store %arg17[%c0_18, %c0_19, %c0_20], %38 {strides = array<i32>} : memref<4x8x8xf32, #tpu.memory_space<vmem>>, vector<1x8x8xf32>,
    %39 = vector.extract_strided_slice %30 {offsets = [0, 64], sizes = [8, 8], strides = [1, 1]} : vector<8x96xf32> to vector<8x8xf32>
    %c0_21 = arith.constant 0 : index
    %c0_22 = arith.constant 0 : index
    %c0_23 = arith.constant 0 : index
    %40 = vector.load %arg18[%c0_21, %c0_22, %c0_23] : memref<4x8x8xf32, #tpu.memory_space<vmem>>, vector<1x8x8xf32>
    %41 = vector.shape_cast %40 : vector<1x8x8xf32> to vector<8x8xf32>
    %42 = vector.shape_cast %39 : vector<8x8xf32> to vector<1x8x8xf32>
    tpu.vector_store %arg18[%c0_21, %c0_22, %c0_23], %42 {strides = array<i32>} : memref<4x8x8xf32, #tpu.memory_space<vmem>>, vector<1x8x8xf32>,
    %43 = vector.extract_strided_slice %30 {offsets = [0, 8], sizes = [8, 8], strides = [1, 1]} : vector<8x96xf32> to vector<8x8xf32>
    %c1 = arith.constant 1 : index
    %c0_24 = arith.constant 0 : index
    %c0_25 = arith.constant 0 : index
    %44 = vector.load %arg16[%c1, %c0_24, %c0_25] : memref<4x8x8xf32, #tpu.memory_space<vmem>>, vector<1x8x8xf32>
    %45 = vector.shape_cast %44 : vector<1x8x8xf32> to vector<8x8xf32>
    %46 = vector.shape_cast %43 : vector<8x8xf32> to vector<1x8x8xf32>
    tpu.vector_store %arg16[%c1, %c0_24, %c0_25], %46 {strides = array<i32>} : memref<4x8x8xf32, #tpu.memory_space<vmem>>, vector<1x8x8xf32>,
    %47 = vector.extract_strided_slice %30 {offsets = [0, 40], sizes = [8, 8], strides = [1, 1]} : vector<8x96xf32> to vector<8x8xf32>
    %c1_26 = arith.constant 1 : index
    %c0_27 = arith.constant 0 : index
    %c0_28 = arith.constant 0 : index
    %48 = vector.load %arg17[%c1_26, %c0_27, %c0_28] : memref<4x8x8xf32, #tpu.memory_space<vmem>>, vector<1x8x8xf32>
    %49 = vector.shape_cast %48 : vector<1x8x8xf32> to vector<8x8xf32>
    %50 = vector.shape_cast %47 : vector<8x8xf32> to vector<1x8x8xf32>
    tpu.vector_store %arg17[%c1_26, %c0_27, %c0_28], %50 {strides = array<i32>} : memref<4x8x8xf32, #tpu.memory_space<vmem>>, vector<1x8x8xf32>,
    %51 = vector.extract_strided_slice %30 {offsets = [0, 72], sizes = [8, 8], strides = [1, 1]} : vector<8x96xf32> to vector<8x8xf32>
    %c1_29 = arith.constant 1 : index
    %c0_30 = arith.constant 0 : index
    %c0_31 = arith.constant 0 : index
    %52 = vector.load %arg18[%c1_29, %c0_30, %c0_31] : memref<4x8x8xf32, #tpu.memory_space<vmem>>, vector<1x8x8xf32>
    %53 = vector.shape_cast %52 : vector<1x8x8xf32> to vector<8x8xf32>
    %54 = vector.shape_cast %51 : vector<8x8xf32> to vector<1x8x8xf32>
    tpu.vector_store %arg18[%c1_29, %c0_30, %c0_31], %54 {strides = array<i32>} : memref<4x8x8xf32, #tpu.memory_space<vmem>>, vector<1x8x8xf32>,
    %55 = vector.extract_strided_slice %30 {offsets = [0, 16], sizes = [8, 8], strides = [1, 1]} : vector<8x96xf32> to vector<8x8xf32>
    %c2 = arith.constant 2 : index
    %c0_32 = arith.constant 0 : index
    %c0_33 = arith.constant 0 : index
    %56 = vector.load %arg16[%c2, %c0_32, %c0_33] : memref<4x8x8xf32, #tpu.memory_space<vmem>>, vector<1x8x8xf32>
    %57 = vector.shape_cast %56 : vector<1x8x8xf32> to vector<8x8xf32>
    %58 = vector.shape_cast %55 : vector<8x8xf32> to vector<1x8x8xf32>
    tpu.vector_store %arg16[%c2, %c0_32, %c0_33], %58 {strides = array<i32>} : memref<4x8x8xf32, #tpu.memory_space<vmem>>, vector<1x8x8xf32>,
    %59 = vector.extract_strided_slice %30 {offsets = [0, 48], sizes = [8, 8], strides = [1, 1]} : vector<8x96xf32> to vector<8x8xf32>
    %c2_34 = arith.constant 2 : index
    %c0_35 = arith.constant 0 : index
    %c0_36 = arith.constant 0 : index
    %60 = vector.load %arg17[%c2_34, %c0_35, %c0_36] : memref<4x8x8xf32, #tpu.memory_space<vmem>>, vector<1x8x8xf32>
    %61 = vector.shape_cast %60 : vector<1x8x8xf32> to vector<8x8xf32>
    %62 = vector.shape_cast %59 : vector<8x8xf32> to vector<1x8x8xf32>
    tpu.vector_store %arg17[%c2_34, %c0_35, %c0_36], %62 {strides = array<i32>} : memref<4x8x8xf32, #tpu.memory_space<vmem>>, vector<1x8x8xf32>,
    %63 = vector.extract_strided_slice %30 {offsets = [0, 80], sizes = [8, 8], strides = [1, 1]} : vector<8x96xf32> to vector<8x8xf32>
    %c2_37 = arith.constant 2 : index
    %c0_38 = arith.constant 0 : index
    %c0_39 = arith.constant 0 : index
    %64 = vector.load %arg18[%c2_37, %c0_38, %c0_39] : memref<4x8x8xf32, #tpu.memory_space<vmem>>, vector<1x8x8xf32>
    %65 = vector.shape_cast %64 : vector<1x8x8xf32> to vector<8x8xf32>
    %66 = vector.shape_cast %63 : vector<8x8xf32> to vector<1x8x8xf32>
    tpu.vector_store %arg18[%c2_37, %c0_38, %c0_39], %66 {strides = array<i32>} : memref<4x8x8xf32, #tpu.memory_space<vmem>>, vector<1x8x8xf32>,
    %67 = vector.extract_strided_slice %30 {offsets = [0, 24], sizes = [8, 8], strides = [1, 1]} : vector<8x96xf32> to vector<8x8xf32>
    %c3 = arith.constant 3 : index
    %c0_40 = arith.constant 0 : index
    %c0_41 = arith.constant 0 : index
    %68 = vector.load %arg16[%c3, %c0_40, %c0_41] : memref<4x8x8xf32, #tpu.memory_space<vmem>>, vector<1x8x8xf32>
    %69 = vector.shape_cast %68 : vector<1x8x8xf32> to vector<8x8xf32>
    %70 = vector.shape_cast %67 : vector<8x8xf32> to vector<1x8x8xf32>
    tpu.vector_store %arg16[%c3, %c0_40, %c0_41], %70 {strides = array<i32>} : memref<4x8x8xf32, #tpu.memory_space<vmem>>, vector<1x8x8xf32>,
    %71 = vector.extract_strided_slice %30 {offsets = [0, 56], sizes = [8, 8], strides = [1, 1]} : vector<8x96xf32> to vector<8x8xf32>
    %c3_42 = arith.constant 3 : index
    %c0_43 = arith.constant 0 : index
    %c0_44 = arith.constant 0 : index
    %72 = vector.load %arg17[%c3_42, %c0_43, %c0_44] : memref<4x8x8xf32, #tpu.memory_space<vmem>>, vector<1x8x8xf32>
    %73 = vector.shape_cast %72 : vector<1x8x8xf32> to vector<8x8xf32>
    %74 = vector.shape_cast %71 : vector<8x8xf32> to vector<1x8x8xf32>
    tpu.vector_store %arg17[%c3_42, %c0_43, %c0_44], %74 {strides = array<i32>} : memref<4x8x8xf32, #tpu.memory_space<vmem>>, vector<1x8x8xf32>,
    %75 = vector.extract_strided_slice %30 {offsets = [0, 88], sizes = [8, 8], strides = [1, 1]} : vector<8x96xf32> to vector<8x8xf32>
    %c3_45 = arith.constant 3 : index
    %c0_46 = arith.constant 0 : index
    %c0_47 = arith.constant 0 : index
    %76 = vector.load %arg18[%c3_45, %c0_46, %c0_47] : memref<4x8x8xf32, #tpu.memory_space<vmem>>, vector<1x8x8xf32>
    %77 = vector.shape_cast %76 : vector<1x8x8xf32> to vector<8x8xf32>
    %78 = vector.shape_cast %75 : vector<8x8xf32> to vector<1x8x8xf32>
    tpu.vector_store %arg18[%c3_45, %c0_46, %c0_47], %78 {strides = array<i32>} : memref<4x8x8xf32, #tpu.memory_space<vmem>>, vector<1x8x8xf32>,
    %c0_48 = arith.constant 0 : index
    %c0_49 = arith.constant 0 : index
    %c0_50 = arith.constant 0 : index
    %79 = vector.load %arg16[%c0_48, %c0_49, %c0_50] : memref<4x8x8xf32, #tpu.memory_space<vmem>>, vector<4x8x8xf32>
    %c0_51 = arith.constant 0 : index
    %c0_52 = arith.constant 0 : index
    %c0_53 = arith.constant 0 : index
    %80 = vector.load %arg17[%c0_51, %c0_52, %c0_53] : memref<4x8x8xf32, #tpu.memory_space<vmem>>, vector<4x8x8xf32>
    %c0_54 = arith.constant 0 : index
    %c0_55 = arith.constant 0 : index
    %c0_56 = arith.constant 0 : index
    %81 = vector.load %arg18[%c0_54, %c0_55, %c0_56] : memref<4x8x8xf32, #tpu.memory_space<vmem>>, vector<4x8x8xf32>
    "tpu.trace_start"() <{level = 10 : i32, message = "htd,hsd->hts"}> : () -> ()
    %cst_57 = arith.constant dense<0.000000e+00> : vector<4x8x8xf32>
    %82 = tpu.matmul %79, %80, %cst_57 {dimension_numbers = #tpu.dot_dimension_numbers<[2], [2], [1], [1], [0, 0, 0, 1, 1, 1], [0], [0]>} : vector<4x8x8xf32>, vector<4x8x8xf32>, vector<4x8x8xf32> -> vector<4x8x8xf32>
    "tpu.trace_stop"() : () -> ()
    %c0_58 = arith.constant 0 : index
    %c0_59 = arith.constant 0 : index
    %83 = vector.load %arg2[%c0_58, %c0_59] : memref<8x8xf32, #tpu.memory_space<vmem>>, vector<8x8xf32>
    %84 = vector.shape_cast %83 : vector<8x8xf32> to vector<1x8x8xf32>
    %85 = vector.broadcast %84 : vector<1x8x8xf32> to vector<4x8x8xf32>
    %86 = arith.addf %82, %85 : vector<4x8x8xf32>
    %cst_60 = arith.constant dense<0xFF800000> : vector<4x8xf32>
    %87 = vector.multi_reduction <maximumf>, %86, %cst_60 [2] : vector<4x8x8xf32> to vector<4x8xf32>
    %88 = vector.shape_cast %87 : vector<4x8xf32> to vector<4x8x1xf32>
    %89 = vector.broadcast %88 : vector<4x8x1xf32> to vector<4x8x8xf32>
    %90 = arith.subf %86, %89 : vector<4x8x8xf32>
    %91 = math.exp %90 : vector<4x8x8xf32>
    %cst_61 = arith.constant dense<0.000000e+00> : vector<4x8xf32>
    %92 = vector.multi_reduction <add>, %91, %cst_61 [2] : vector<4x8x8xf32> to vector<4x8xf32>
    %93 = vector.shape_cast %92 : vector<4x8xf32> to vector<4x8x1xf32>
    %94 = tpu.reciprocal %93 : vector<4x8x1xf32> -> vector<4x8x1xf32>
    %95 = vector.broadcast %94 : vector<4x8x1xf32> to vector<4x8x8xf32>
    %96 = arith.mulf %91, %95 : vector<4x8x8xf32>
    "tpu.trace_start"() <{level = 10 : i32, message = "hts,hsd->htd"}> : () -> ()
    %cst_62 = arith.constant dense<0.000000e+00> : vector<4x8x8xf32>
    %97 = tpu.matmul %96, %81, %cst_62 {dimension_numbers = #tpu.dot_dimension_numbers<[2], [1], [1], [2], [0, 0, 0, 1, 1, 2], [0], [0]>} : vector<4x8x8xf32>, vector<4x8x8xf32>, vector<4x8x8xf32> -> vector<4x8x8xf32>
    "tpu.trace_stop"() : () -> ()
    %98 = vector.extract_strided_slice %97 {offsets = [0, 0, 0], sizes = [1, 8, 8], strides = [1, 1, 1]} : vector<4x8x8xf32> to vector<1x8x8xf32>
    %99 = vector.shape_cast %98 : vector<1x8x8xf32> to vector<8x8xf32>
    %c0_63 = arith.constant 0 : index
    %c0_64 = arith.constant 0 : index
    %100 = vector.load %arg19[%c0_63, %c0_64] : memref<8x32xf32, #tpu.memory_space<vmem>>, vector<8x8xf32>
    tpu.vector_store %arg19[%c0_63, %c0_64], %99 {strides = array<i32>} : memref<8x32xf32, #tpu.memory_space<vmem>>, vector<8x8xf32>,
    %101 = vector.extract_strided_slice %97 {offsets = [1, 0, 0], sizes = [1, 8, 8], strides = [1, 1, 1]} : vector<4x8x8xf32> to vector<1x8x8xf32>
    %102 = vector.shape_cast %101 : vector<1x8x8xf32> to vector<8x8xf32>
    %c0_65 = arith.constant 0 : index
    %c8 = arith.constant 8 : index
    %103 = vector.load %arg19[%c0_65, %c8] : memref<8x32xf32, #tpu.memory_space<vmem>>, vector<8x8xf32>
    tpu.vector_store %arg19[%c0_65, %c8], %102 {strides = array<i32>} : memref<8x32xf32, #tpu.memory_space<vmem>>, vector<8x8xf32>,
    %104 = vector.extract_strided_slice %97 {offsets = [2, 0, 0], sizes = [1, 8, 8], strides = [1, 1, 1]} : vector<4x8x8xf32> to vector<1x8x8xf32>
    %105 = vector.shape_cast %104 : vector<1x8x8xf32> to vector<8x8xf32>
    %c0_66 = arith.constant 0 : index
    %c16 = arith.constant 16 : index
    %106 = vector.load %arg19[%c0_66, %c16] : memref<8x32xf32, #tpu.memory_space<vmem>>, vector<8x8xf32>
    tpu.vector_store %arg19[%c0_66, %c16], %105 {strides = array<i32>} : memref<8x32xf32, #tpu.memory_space<vmem>>, vector<8x8xf32>,
    %107 = vector.extract_strided_slice %97 {offsets = [3, 0, 0], sizes = [1, 8, 8], strides = [1, 1, 1]} : vector<4x8x8xf32> to vector<1x8x8xf32>
    %108 = vector.shape_cast %107 : vector<1x8x8xf32> to vector<8x8xf32>
    %c0_67 = arith.constant 0 : index
    %c24 = arith.constant 24 : index
    %109 = vector.load %arg19[%c0_67, %c24] : memref<8x32xf32, #tpu.memory_space<vmem>>, vector<8x8xf32>
    tpu.vector_store %arg19[%c0_67, %c24], %108 {strides = array<i32>} : memref<8x32xf32, #tpu.memory_space<vmem>>, vector<8x8xf32>,
    %c0_68 = arith.constant 0 : index
    %c0_69 = arith.constant 0 : index
    %110 = vector.load %arg19[%c0_68, %c0_69] : memref<8x32xf32, #tpu.memory_space<vmem>>, vector<8x32xf32>
    %c0_70 = arith.constant 0 : index
    %c0_71 = arith.constant 0 : index
    %111 = vector.load %arg7[%c0_70, %c0_71] : memref<32x32xf32, #tpu.memory_space<vmem>>, vector<32x32xf32>
    %cst_72 = arith.constant dense<0.000000e+00> : vector<8x32xf32>
    %112 = tpu.matmul %110, %111, %cst_72 {dimension_numbers = #tpu.dot_dimension_numbers<[1], [0], [0], [1], [0, 0, 1, 1], [], []>} : vector<8x32xf32>, vector<32x32xf32>, vector<8x32xf32> -> vector<8x32xf32>
    %113 = arith.addf %1, %112 : vector<8x32xf32>
    %c0_73 = arith.constant 0 : index
    %c0_74 = arith.constant 0 : index
    %114 = vector.load %arg8[%c0_73, %c0_74] : memref<1x32xf32, #tpu.memory_space<vmem>>, vector<1x32xf32>
    %115 = vector.broadcast %114 : vector<1x32xf32> to vector<8x32xf32>
    %116 = arith.addf %113, %115 : vector<8x32xf32>
    %c0_75 = arith.constant 0 : index
    %c0_76 = arith.constant 0 : index
    %117 = vector.load %arg9[%c0_75, %c0_76] : memref<1x32xf32, #tpu.memory_space<vmem>>, vector<1x32xf32>
    %c0_77 = arith.constant 0 : index
    %c0_78 = arith.constant 0 : index
    %118 = vector.load %arg10[%c0_77, %c0_78] : memref<1x32xf32, #tpu.memory_space<vmem>>, vector<1x32xf32>
    %cst_79 = arith.constant dense<0.000000e+00> : vector<8xf32>
    %119 = vector.multi_reduction <add>, %116, %cst_79 [1] : vector<8x32xf32> to vector<8xf32>
    %120 = vector.shape_cast %119 : vector<8xf32> to vector<8x1xf32>
    %cst_80 = arith.constant 3.200000e+01 : f32
    %121 = vector.broadcast %cst_80 : f32 to vector<8x1xf32>
    %122 = arith.divf %120, %121 : vector<8x1xf32>
    %123 = vector.broadcast %122 : vector<8x1xf32> to vector<8x32xf32>
    %124 = arith.subf %116, %123 : vector<8x32xf32>
    %125 = arith.mulf %124, %124 : vector<8x32xf32>
    %cst_81 = arith.constant dense<0.000000e+00> : vector<8xf32>
    %126 = vector.multi_reduction <add>, %125, %cst_81 [1] : vector<8x32xf32> to vector<8xf32>
    %127 = vector.shape_cast %126 : vector<8xf32> to vector<8x1xf32>
    %cst_82 = arith.constant 3.200000e+01 : f32
    %128 = vector.broadcast %cst_82 : f32 to vector<8x1xf32>
    %129 = arith.divf %127, %128 : vector<8x1xf32>
    %130 = vector.broadcast %122 : vector<8x1xf32> to vector<8x32xf32>
    %131 = arith.subf %116, %130 : vector<8x32xf32>
    %cst_83 = arith.constant 9.99999974E-6 : f32
    %132 = vector.broadcast %cst_83 : f32 to vector<8x1xf32>
    %133 = arith.addf %129, %132 : vector<8x1xf32>
    %134 = math.rsqrt %133 : vector<8x1xf32>
    %135 = vector.broadcast %134 : vector<8x1xf32> to vector<8x32xf32>
    %136 = arith.mulf %131, %135 : vector<8x32xf32>
    %137 = vector.broadcast %117 : vector<1x32xf32> to vector<8x32xf32>
    %138 = arith.mulf %136, %137 : vector<8x32xf32>
    %139 = vector.broadcast %118 : vector<1x32xf32> to vector<8x32xf32>
    %140 = arith.addf %138, %139 : vector<8x32xf32>
    %c0_84 = arith.constant 0 : index
    %c0_85 = arith.constant 0 : index
    %141 = vector.load %arg11[%c0_84, %c0_85] : memref<32x128xf32, #tpu.memory_space<vmem>>, vector<32x128xf32>
    %cst_86 = arith.constant dense<0.000000e+00> : vector<8x128xf32>
    %142 = tpu.matmul %140, %141, %cst_86 {dimension_numbers = #tpu.dot_dimension_numbers<[1], [0], [0], [1], [0, 0, 1, 1], [], []>} : vector<8x32xf32>, vector<32x128xf32>, vector<8x128xf32> -> vector<8x128xf32>
    %c0_87 = arith.constant 0 : index
    %c0_88 = arith.constant 0 : index
    %143 = vector.load %arg12[%c0_87, %c0_88] : memref<1x128xf32, #tpu.memory_space<vmem>>, vector<1x128xf32>
    %144 = vector.broadcast %143 : vector<1x128xf32> to vector<8x128xf32>
    %145 = arith.addf %142, %144 : vector<8x128xf32>
    %cst_89 = arith.constant 5.000000e-01 : f32
    %146 = vector.broadcast %cst_89 : f32 to vector<8x128xf32>
    %147 = arith.mulf %146, %145 : vector<8x128xf32>
    %cst_90 = arith.constant 0.707106769 : f32
    %148 = vector.broadcast %cst_90 : f32 to vector<8x128xf32>
    %149 = arith.mulf %145, %148 : vector<8x128xf32>
    %150 = math.erf %149 : vector<8x128xf32>
    %cst_91 = arith.constant 1.000000e+00 : f32
    %151 = vector.broadcast %cst_91 : f32 to vector<8x128xf32>
    %152 = arith.addf %151, %150 : vector<8x128xf32>
    %153 = arith.mulf %147, %152 : vector<8x128xf32>
    %c0_92 = arith.constant 0 : index
    %c0_93 = arith.constant 0 : index
    %154 = vector.load %arg13[%c0_92, %c0_93] : memref<128x32xf32, #tpu.memory_space<vmem>>, vector<128x32xf32>
    %cst_94 = arith.constant dense<0.000000e+00> : vector<8x32xf32>
    %155 = tpu.matmul %153, %154, %cst_94 {dimension_numbers = #tpu.dot_dimension_numbers<[1], [0], [0], [1], [0, 0, 1, 1], [], []>} : vector<8x128xf32>, vector<128x32xf32>, vector<8x32xf32> -> vector<8x32xf32>
    %c0_95 = arith.constant 0 : index
    %c0_96 = arith.constant 0 : index
    %156 = vector.load %arg14[%c0_95, %c0_96] : memref<1x32xf32, #tpu.memory_space<vmem>>, vector<1x32xf32>
    %157 = vector.broadcast %156 : vector<1x32xf32> to vector<8x32xf32>
    %158 = arith.addf %155, %157 : vector<8x32xf32>
    %159 = arith.addf %116, %158 : vector<8x32xf32>
    %c0_97 = arith.constant 0 : index
    %c0_98 = arith.constant 0 : index
    %c0_99 = arith.constant 0 : index
    %160 = vector.load %arg15[%c0_97, %c0_98, %c0_99] : memref<1x8x32xf32, #tpu.memory_space<vmem>>, vector<1x8x32xf32>
    %161 = vector.shape_cast %160 : vector<1x8x32xf32> to vector<8x32xf32>
    %162 = vector.shape_cast %159 : vector<8x32xf32> to vector<1x8x32xf32>
    tpu.vector_store %arg15[%c0_97, %c0_98, %c0_99], %162 {strides = array<i32>} : memref<1x8x32xf32, #tpu.memory_space<vmem>>, vector<1x8x32xf32>,
    return
  }
  func.func @transform_0(%arg0: i32) -> (i32, i32, i32) {
    %c0_i32 = arith.constant 0 : i32
    %c0_i32_0 = arith.constant 0 : i32
    %c0_i32_1 = arith.constant 0 : i32
    return %arg0, %c0_i32, %c0_i32_0 : i32, i32, i32
  }
  func.func @transform_1(%arg0: i32) -> (i32, i32) {
    %c0_i32 = arith.constant 0 : i32
    %c0_i32_0 = arith.constant 0 : i32
    %c0_i32_1 = arith.constant 0 : i32
    return %c0_i32, %c0_i32_0 : i32, i32
  }
  func.func @transform_2(%arg0: i32) -> (i32, i32) {
    %c0_i32 = arith.constant 0 : i32
    %c0_i32_0 = arith.constant 0 : i32
    %c0_i32_1 = arith.constant 0 : i32
    return %c0_i32, %c0_i32_0 : i32, i32
  }
  func.func @transform_3(%arg0: i32) -> (i32, i32) {
    %c0_i32 = arith.constant 0 : i32
    %c0_i32_0 = arith.constant 0 : i32
    %c0_i32_1 = arith.constant 0 : i32
    return %c0_i32, %c0_i32_0 : i32, i32
  }
  func.func @transform_4(%arg0: i32) -> (i32, i32) {
    %c0_i32 = arith.constant 0 : i32
    %c0_i32_0 = arith.constant 0 : i32
    %c0_i32_1 = arith.constant 0 : i32
    return %c0_i32, %c0_i32_0 : i32, i32
  }
  func.func @transform_5(%arg0: i32) -> (i32, i32) {
    %c0_i32 = arith.constant 0 : i32
    %c0_i32_0 = arith.constant 0 : i32
    %c0_i32_1 = arith.constant 0 : i32
    return %c0_i32, %c0_i32_0 : i32, i32
  }
  func.func @transform_6(%arg0: i32) -> (i32, i32) {
    %c0_i32 = arith.constant 0 : i32
    %c0_i32_0 = arith.constant 0 : i32
    %c0_i32_1 = arith.constant 0 : i32
    return %c0_i32, %c0_i32_0 : i32, i32
  }
  func.func @transform_7(%arg0: i32) -> (i32, i32) {
    %c0_i32 = arith.constant 0 : i32
    %c0_i32_0 = arith.constant 0 : i32
    %c0_i32_1 = arith.constant 0 : i32
    return %c0_i32, %c0_i32_0 : i32, i32
  }
  func.func @transform_8(%arg0: i32) -> (i32, i32) {
    %c0_i32 = arith.constant 0 : i32
    %c0_i32_0 = arith.constant 0 : i32
    %c0_i32_1 = arith.constant 0 : i32
    return %c0_i32, %c0_i32_0 : i32, i32
  }
  func.func @transform_9(%arg0: i32) -> (i32, i32) {
    %c0_i32 = arith.constant 0 : i32
    %c0_i32_0 = arith.constant 0 : i32
    %c0_i32_1 = arith.constant 0 : i32
    return %c0_i32, %c0_i32_0 : i32, i32
  }
  func.func @transform_10(%arg0: i32) -> (i32, i32) {
    %c0_i32 = arith.constant 0 : i32
    %c0_i32_0 = arith.constant 0 : i32
    %c0_i32_1 = arith.constant 0 : i32
    return %c0_i32, %c0_i32_0 : i32, i32
  }
  func.func @transform_11(%arg0: i32) -> (i32, i32) {
    %c0_i32 = arith.constant 0 : i32
    %c0_i32_0 = arith.constant 0 : i32
    %c0_i32_1 = arith.constant 0 : i32
    return %c0_i32, %c0_i32_0 : i32, i32
  }
  func.func @transform_12(%arg0: i32) -> (i32, i32) {
    %c0_i32 = arith.constant 0 : i32
    %c0_i32_0 = arith.constant 0 : i32
    %c0_i32_1 = arith.constant 0 : i32
    return %c0_i32, %c0_i32_0 : i32, i32
  }
  func.func @transform_13(%arg0: i32) -> (i32, i32) {
    %c0_i32 = arith.constant 0 : i32
    %c0_i32_0 = arith.constant 0 : i32
    %c0_i32_1 = arith.constant 0 : i32
    return %c0_i32, %c0_i32_0 : i32, i32
  }
  func.func @transform_14(%arg0: i32) -> (i32, i32, i32) {
    %c0_i32 = arith.constant 0 : i32
    %c0_i32_0 = arith.constant 0 : i32
    %c0_i32_1 = arith.constant 0 : i32
    return %arg0, %c0_i32, %c0_i32_0 : i32, i32, i32
  }
}

</mosaic_0001>

<llo_original>
// kernel: tpu_custom_call.1
$region0: #{tpu_custom_call.1}
  #allocation0 [shape = 'u32[]', space=smem, size = 0x4, offset = 0x4, fixed_abs, tag = 'smem constant byte address 0x4 - core index']
  #allocation1 [shape = 'u32[72,128]{1,0:T(1,128)}', space=vmem, size = 0x9000, scoped, tag = 'internal scratch']
  #allocation2 [shape = 'f32[4,8,8]{2,1,0:T(8,128)}', space=vmem, size = 0x4000, scoped, tag = 'scratch operand']
  #allocation3 [shape = 'f32[4,8,8]{2,1,0:T(8,128)}', space=vmem, size = 0x4000, scoped, tag = 'scratch operand']
  #allocation4 [shape = 'f32[4,8,8]{2,1,0:T(8,128)}', space=vmem, size = 0x4000, scoped, tag = 'scratch operand']
  #allocation5 [shape = 'f32[8,32]{1,0:T(8,128)}', space=vmem, size = 0x1000, scoped, tag = 'scratch operand']
  %s0 = inlined_call_operand.vmem [shape: f32[2,8,32], index: 0, kind: input, shape index: {}]
  %s1 = inlined_call_operand.vmem [shape: f32[8,8], index: 1, kind: input, shape index: {}]
  %s2 = inlined_call_operand.vmem [shape: f32[1,32], index: 2, kind: input, shape index: {}]
  %s3 = inlined_call_operand.vmem [shape: f32[1,32], index: 3, kind: input, shape index: {}]
  %s4 = inlined_call_operand.vmem [shape: f32[32,96], index: 4, kind: input, shape index: {}]
  %s5 = inlined_call_operand.vmem [shape: f32[1,96], index: 5, kind: input, shape index: {}]
  %s6 = inlined_call_operand.vmem [shape: f32[32,32], index: 6, kind: input, shape index: {}]
  %s7 = inlined_call_operand.vmem [shape: f32[1,32], index: 7, kind: input, shape index: {}]
  %s8 = inlined_call_operand.vmem [shape: f32[1,32], index: 8, kind: input, shape index: {}]
  %s9 = inlined_call_operand.vmem [shape: f32[1,32], index: 9, kind: input, shape index: {}]
  %s10 = inlined_call_operand.vmem [shape: f32[32,128], index: 10, kind: input, shape index: {}]
  %s11 = inlined_call_operand.vmem [shape: f32[1,128], index: 11, kind: input, shape index: {}]
  %s12 = inlined_call_operand.vmem [shape: f32[128,32], index: 12, kind: input, shape index: {}]
  %s13 = inlined_call_operand.vmem [shape: f32[1,32], index: 13, kind: input, shape index: {}]
  %s14 = inlined_call_operand.hbm [shape: f32[2,8,32], index: 14, kind: output, shape index: {}]
  %s15 = sld [smem:[#allocation0]]
  $region89: #{tpu_custom_call.1} parent=0
    _
  %s17 = ssub.s32 1, %s15
  %s18 = scalar_select 0, %s17, %s15
  $region1: #{tpu_custom_call.1} parent=0
    #allocation6 [shape = 'u8[8192]{0}', space=vmem, size = 0x2000, scoped, tag = 'output window, operand 0']
    #allocation7 [shape = 's32[2]{0}', space=sflag, size = 0x8, scoped, tag = 'scoped memory for tpu_custom_call.1']
    %19 = vsyncpa [#allocation7], 0
    %s20 = scalar_lea.sflag [#allocation7], 1
    %21 = vsyncpa %s20, 0
    loop: start=0, step=1, limit=4
    $region2: #{tpu_custom_call.1} parent=1 // loop_pre_header
      _
    $region3: #{tpu_custom_call.1} parent=1 // loop_header
      %s23 = sphi 0, %s27
      %p24 = scmp.ge.s32.totalorder %s23, 4
      %s33 = sphi 0, %s35
      %s36 = sphi 0, %s33
      %s37 = sphi 0, %s36
      %s53 = sphi 0, %s37
      %s57 = sphi 0, %s57
      %s59 = sphi 0, %s57
      %s60 = sphi 0, %s59
      %s74 = sphi 0, %s60
      %s78 = sphi 0, %s78
      %s80 = sphi 0, %s78
      %s81 = sphi 0, %s80
      %s95 = sphi 0, %s81
      %s99 = sphi 0, %s99
      %s101 = sphi 0, %s99
      %s102 = sphi 0, %s101
      %s116 = sphi 0, %s102
      %s120 = sphi 0, %s120
      %s122 = sphi 0, %s120
      %s123 = sphi 0, %s122
      %s137 = sphi 0, %s123
      %s141 = sphi 0, %s141
      %s143 = sphi 0, %s141
      %s144 = sphi 0, %s143
      %s158 = sphi 0, %s144
      %s162 = sphi 0, %s162
      %s164 = sphi 0, %s162
      %s165 = sphi 0, %s164
      %s179 = sphi 0, %s165
      %s183 = sphi 0, %s183
      %s185 = sphi 0, %s183
      %s186 = sphi 0, %s185
      %s200 = sphi 0, %s186
      %s204 = sphi 0, %s204
      %s206 = sphi 0, %s204
      %s207 = sphi 0, %s206
      %s221 = sphi 0, %s207
      %s225 = sphi 0, %s225
      %s227 = sphi 0, %s225
      %s228 = sphi 0, %s227
      %s242 = sphi 0, %s228
      %s246 = sphi 0, %s246
      %s248 = sphi 0, %s246
      %s249 = sphi 0, %s248
      %s263 = sphi 0, %s249
      %s267 = sphi 0, %s267
      %s269 = sphi 0, %s267
      %s270 = sphi 0, %s269
      %s284 = sphi 0, %s270
      %s288 = sphi 0, %s288
      %s290 = sphi 0, %s288
      %s291 = sphi 0, %s290
      %s305 = sphi 0, %s291
      %s309 = sphi 0, %s309
      %s311 = sphi 0, %s309
      %s312 = sphi 0, %s311
      %s326 = sphi 0, %s312
      %s332 = sphi 0, %s334
      %s335 = sphi 0, %s332
      %s336 = sphi 0, %s335
      %s352 = sphi 0, %s336
    $region4: #{tpu_custom_call.1} parent=1 // loop_header_branch
      %26 = sbr.rel (%p24) target = $region8
    $region5: #{tpu_custom_call.1} parent=1 // loop_body
      %s28 = ssub.s32 %s23, 1
      %s29 = ssub.s32 %s23, 2
      %s30 = sadd.s32 %s23, 1
      %s31 = ssub.s32 %s23, %s30
      %p32 = scmp.eq.s32.totalorder %s31, 0
      %s34 = sadd.s32 %s33, 1
      %s35 = scalar_select %p32, %s33, %s34
      %p38 = pneg %p32
      %p39 = scmp.eq.s32.totalorder %s23, 1
      %p40 = por %p38, %p39
      %p41 = scmp.ne.s32.totalorder %s33, %s36
      %p42 = scmp.eq.s32.totalorder %s23, 0
      %p43 = por %p41, %p42
      %p44 = scmp.ne.s32.totalorder %s33, %s36
      %p45 = scmp.eq.s32.totalorder %s28, 1
      %p46 = por %p44, %p45
      %p47 = scmp.ne.s32.totalorder %s36, %s37
      %p48 = scmp.eq.s32.totalorder %s28, 0
      %p49 = por %p47, %p48
      %p50 = scmp.ne.s32.totalorder %s36, %s37
      %p51 = scmp.eq.s32.totalorder %s29, 1
      %p52 = por %p50, %p51
      %p54 = scmp.ne.s32.totalorder %s37, %s53
      %p55 = scmp.eq.s32.totalorder %s29, 0
      %p56 = por %p54, %p55
      %s58 = sadd.s32 %s57, 1
      %p61 = scmp.eq.s32.totalorder %s23, 1
      %p62 = scmp.ne.s32.totalorder %s57, %s59
      %p63 = scmp.eq.s32.totalorder %s23, 0
      %p64 = por %p62, %p63
      %p65 = scmp.ne.s32.totalorder %s57, %s59
      %p66 = scmp.eq.s32.totalorder %s28, 1
      %p67 = por %p65, %p66
      %p68 = scmp.ne.s32.totalorder %s59, %s60
      %p69 = scmp.eq.s32.totalorder %s28, 0
      %p70 = por %p68, %p69
      %p71 = scmp.ne.s32.totalorder %s59, %s60
      %p72 = scmp.eq.s32.totalorder %s29, 1
      %p73 = por %p71, %p72
      %p75 = scmp.ne.s32.totalorder %s60, %s74
      %p76 = scmp.eq.s32.totalorder %s29, 0
      %p77 = por %p75, %p76
      %s79 = sadd.s32 %s78, 1
      %p82 = scmp.eq.s32.totalorder %s23, 1
      %p83 = scmp.ne.s32.totalorder %s78, %s80
      %p84 = scmp.eq.s32.totalorder %s23, 0
      %p85 = por %p83, %p84
      %p86 = scmp.ne.s32.totalorder %s78, %s80
      %p87 = scmp.eq.s32.totalorder %s28, 1
      %p88 = por %p86, %p87
      %p89 = scmp.ne.s32.totalorder %s80, %s81
      %p90 = scmp.eq.s32.totalorder %s28, 0
      %p91 = por %p89, %p90
      %p92 = scmp.ne.s32.totalorder %s80, %s81
      %p93 = scmp.eq.s32.totalorder %s29, 1
      %p94 = por %p92, %p93
      %p96 = scmp.ne.s32.totalorder %s81, %s95
      %p97 = scmp.eq.s32.totalorder %s29, 0
      %p98 = por %p96, %p97
      %s100 = sadd.s32 %s99, 1
      %p103 = scmp.eq.s32.totalorder %s23, 1
      %p104 = scmp.ne.s32.totalorder %s99, %s101
      %p105 = scmp.eq.s32.totalorder %s23, 0
      %p106 = por %p104, %p105
      %p107 = scmp.ne.s32.totalorder %s99, %s101
      %p108 = scmp.eq.s32.totalorder %s28, 1
      %p109 = por %p107, %p108
      %p110 = scmp.ne.s32.totalorder %s101, %s102
      %p111 = scmp.eq.s32.totalorder %s28, 0
      %p112 = por %p110, %p111
      %p113 = scmp.ne.s32.totalorder %s101, %s102
      %p114 = scmp.eq.s32.totalorder %s29, 1
      %p115 = por %p113, %p114
      %p117 = scmp.ne.s32.totalorder %s102, %s116
      %p118 = scmp.eq.s32.totalorder %s29, 0
      %p119 = por %p117, %p118
      %s121 = sadd.s32 %s120, 1
      %p124 = scmp.eq.s32.totalorder %s23, 1
      %p125 = scmp.ne.s32.totalorder %s120, %s122
      %p126 = scmp.eq.s32.totalorder %s23, 0
      %p127 = por %p125, %p126
      %p128 = scmp.ne.s32.totalorder %s120, %s122
      %p129 = scmp.eq.s32.totalorder %s28, 1
      %p130 = por %p128, %p129
      %p131 = scmp.ne.s32.totalorder %s122, %s123
      %p132 = scmp.eq.s32.totalorder %s28, 0
      %p133 = por %p131, %p132
      %p134 = scmp.ne.s32.totalorder %s122, %s123
      %p135 = scmp.eq.s32.totalorder %s29, 1
      %p136 = por %p134, %p135
      %p138 = scmp.ne.s32.totalorder %s123, %s137
      %p139 = scmp.eq.s32.totalorder %s29, 0
      %p140 = por %p138, %p139
      %s142 = sadd.s32 %s141, 1
      %p145 = scmp.eq.s32.totalorder %s23, 1
      %p146 = scmp.ne.s32.totalorder %s141, %s143
      %p147 = scmp.eq.s32.totalorder %s23, 0
      %p148 = por %p146, %p147
      %p149 = scmp.ne.s32.totalorder %s141, %s143
      %p150 = scmp.eq.s32.totalorder %s28, 1
      %p151 = por %p149, %p150
      %p152 = scmp.ne.s32.totalorder %s143, %s144
      %p153 = scmp.eq.s32.totalorder %s28, 0
      %p154 = por %p152, %p153
      %p155 = scmp.ne.s32.totalorder %s143, %s144
      %p156 = scmp.eq.s32.totalorder %s29, 1
      %p157 = por %p155, %p156
      %p159 = scmp.ne.s32.totalorder %s144, %s158
      %p160 = scmp.eq.s32.totalorder %s29, 0
      %p161 = por %p159, %p160
      %s163 = sadd.s32 %s162, 1
      %p166 = scmp.eq.s32.totalorder %s23, 1
      %p167 = scmp.ne.s32.totalorder %s162, %s164
      %p168 = scmp.eq.s32.totalorder %s23, 0
      %p169 = por %p167, %p168
      %p170 = scmp.ne.s32.totalorder %s162, %s164
      %p171 = scmp.eq.s32.totalorder %s28, 1
      %p172 = por %p170, %p171
      %p173 = scmp.ne.s32.totalorder %s164, %s165
      %p174 = scmp.eq.s32.totalorder %s28, 0
      %p175 = por %p173, %p174
      %p176 = scmp.ne.s32.totalorder %s164, %s165
      %p177 = scmp.eq.s32.totalorder %s29, 1
      %p178 = por %p176, %p177
      %p180 = scmp.ne.s32.totalorder %s165, %s179
      %p181 = scmp.eq.s32.totalorder %s29, 0
      %p182 = por %p180, %p181
      %s184 = sadd.s32 %s183, 1
      %p187 = scmp.eq.s32.totalorder %s23, 1
      %p188 = scmp.ne.s32.totalorder %s183, %s185
      %p189 = scmp.eq.s32.totalorder %s23, 0
      %p190 = por %p188, %p189
      %p191 = scmp.ne.s32.totalorder %s183, %s185
      %p192 = scmp.eq.s32.totalorder %s28, 1
      %p193 = por %p191, %p192
      %p194 = scmp.ne.s32.totalorder %s185, %s186
      %p195 = scmp.eq.s32.totalorder %s28, 0
      %p196 = por %p194, %p195
      %p197 = scmp.ne.s32.totalorder %s185, %s186
      %p198 = scmp.eq.s32.totalorder %s29, 1
      %p199 = por %p197, %p198
      %p201 = scmp.ne.s32.totalorder %s186, %s200
      %p202 = scmp.eq.s32.totalorder %s29, 0
      %p203 = por %p201, %p202
      %s205 = sadd.s32 %s204, 1
      %p208 = scmp.eq.s32.totalorder %s23, 1
      %p209 = scmp.ne.s32.totalorder %s204, %s206
      %p210 = scmp.eq.s32.totalorder %s23, 0
      %p211 = por %p209, %p210
      %p212 = scmp.ne.s32.totalorder %s204, %s206
      %p213 = scmp.eq.s32.totalorder %s28, 1
      %p214 = por %p212, %p213
      %p215 = scmp.ne.s32.totalorder %s206, %s207
      %p216 = scmp.eq.s32.totalorder %s28, 0
      %p217 = por %p215, %p216
      %p218 = scmp.ne.s32.totalorder %s206, %s207
      %p219 = scmp.eq.s32.totalorder %s29, 1
      %p220 = por %p218, %p219
      %p222 = scmp.ne.s32.totalorder %s207, %s221
      %p223 = scmp.eq.s32.totalorder %s29, 0
      %p224 = por %p222, %p223
      %s226 = sadd.s32 %s225, 1
      %p229 = scmp.eq.s32.totalorder %s23, 1
      %p230 = scmp.ne.s32.totalorder %s225, %s227
      %p231 = scmp.eq.s32.totalorder %s23, 0
      %p232 = por %p230, %p231
      %p233 = scmp.ne.s32.totalorder %s225, %s227
      %p234 = scmp.eq.s32.totalorder %s28, 1
      %p235 = por %p233, %p234
      %p236 = scmp.ne.s32.totalorder %s227, %s228
      %p237 = scmp.eq.s32.totalorder %s28, 0
      %p238 = por %p236, %p237
      %p239 = scmp.ne.s32.totalorder %s227, %s228
      %p240 = scmp.eq.s32.totalorder %s29, 1
      %p241 = por %p239, %p240
      %p243 = scmp.ne.s32.totalorder %s228, %s242
      %p244 = scmp.eq.s32.totalorder %s29, 0
      %p245 = por %p243, %p244
      %s247 = sadd.s32 %s246, 1
      %p250 = scmp.eq.s32.totalorder %s23, 1
      %p251 = scmp.ne.s32.totalorder %s246, %s248
      %p252 = scmp.eq.s32.totalorder %s23, 0
      %p253 = por %p251, %p252
      %p254 = scmp.ne.s32.totalorder %s246, %s248
      %p255 = scmp.eq.s32.totalorder %s28, 1
      %p256 = por %p254, %p255
      %p257 = scmp.ne.s32.totalorder %s248, %s249
      %p258 = scmp.eq.s32.totalorder %s28, 0
      %p259 = por %p257, %p258
      %p260 = scmp.ne.s32.totalorder %s248, %s249
      %p261 = scmp.eq.s32.totalorder %s29, 1
      %p262 = por %p260, %p261
      %p264 = scmp.ne.s32.totalorder %s249, %s263
      %p265 = scmp.eq.s32.totalorder %s29, 0
      %p266 = por %p264, %p265
      %s268 = sadd.s32 %s267, 1
      %p271 = scmp.eq.s32.totalorder %s23, 1
      %p272 = scmp.ne.s32.totalorder %s267, %s269
      %p273 = scmp.eq.s32.totalorder %s23, 0
      %p274 = por %p272, %p273
      %p275 = scmp.ne.s32.totalorder %s267, %s269
      %p276 = scmp.eq.s32.totalorder %s28, 1
      %p277 = por %p275, %p276
      %p278 = scmp.ne.s32.totalorder %s269, %s270
      %p279 = scmp.eq.s32.totalorder %s28, 0
      %p280 = por %p278, %p279
      %p281 = scmp.ne.s32.totalorder %s269, %s270
      %p282 = scmp.eq.s32.totalorder %s29, 1
      %p283 = por %p281, %p282
      %p285 = scmp.ne.s32.totalorder %s270, %s284
      %p286 = scmp.eq.s32.totalorder %s29, 0
      %p287 = por %p285, %p286
      %s289 = sadd.s32 %s288, 1
      %p292 = scmp.eq.s32.totalorder %s23, 1
      %p293 = scmp.ne.s32.totalorder %s288, %s290
      %p294 = scmp.eq.s32.totalorder %s23, 0
      %p295 = por %p293, %p294
      %p296 = scmp.ne.s32.totalorder %s288, %s290
      %p297 = scmp.eq.s32.totalorder %s28, 1
      %p298 = por %p296, %p297
      %p299 = scmp.ne.s32.totalorder %s290, %s291
      %p300 = scmp.eq.s32.totalorder %s28, 0
      %p301 = por %p299, %p300
      %p302 = scmp.ne.s32.totalorder %s290, %s291
      %p303 = scmp.eq.s32.totalorder %s29, 1
      %p304 = por %p302, %p303
      %p306 = scmp.ne.s32.totalorder %s291, %s305
      %p307 = scmp.eq.s32.totalorder %s29, 0
      %p308 = por %p306, %p307
      %s310 = sadd.s32 %s309, 1
      %p313 = scmp.eq.s32.totalorder %s23, 1
      %p314 = scmp.ne.s32.totalorder %s309, %s311
      %p315 = scmp.eq.s32.totalorder %s23, 0
      %p316 = por %p314, %p315
      %p317 = scmp.ne.s32.totalorder %s309, %s311
      %p318 = scmp.eq.s32.totalorder %s28, 1
      %p319 = por %p317, %p318
      %p320 = scmp.ne.s32.totalorder %s311, %s312
      %p321 = scmp.eq.s32.totalorder %s28, 0
      %p322 = por %p320, %p321
      %p323 = scmp.ne.s32.totalorder %s311, %s312
      %p324 = scmp.eq.s32.totalorder %s29, 1
      %p325 = por %p323, %p324
      %p327 = scmp.ne.s32.totalorder %s312, %s326
      %p328 = scmp.eq.s32.totalorder %s29, 0
      %p329 = por %p327, %p328
      %s330 = ssub.s32 %s23, %s30
      %p331 = scmp.eq.s32.totalorder %s330, 0
      %s333 = sadd.s32 %s332, 1
      %s334 = scalar_select %p331, %s332, %s333
      %p337 = pneg %p331
      %p338 = scmp.eq.s32.totalorder %s23, 1
      %p339 = por %p337, %p338
      %p340 = scmp.ne.s32.totalorder %s332, %s335
      %p341 = scmp.eq.s32.totalorder %s23, 0
      %p342 = por %p340, %p341
      %p343 = scmp.ne.s32.totalorder %s332, %s335
      %p344 = scmp.eq.s32.totalorder %s28, 1
      %p345 = por %p343, %p344
      %p346 = scmp.ne.s32.totalorder %s335, %s336
      %p347 = scmp.eq.s32.totalorder %s28, 0
      %p348 = por %p346, %p347
      %p349 = scmp.ne.s32.totalorder %s335, %s336
      %p350 = scmp.eq.s32.totalorder %s29, 1
      %p351 = por %p349, %p350
      %p353 = scmp.ne.s32.totalorder %s336, %s352
      %p354 = scmp.eq.s32.totalorder %s29, 0
      %p355 = por %p353, %p354
      %p356 = scmp.le.s32.totalorder 1, %s23
      %p357 = scmp.lt.s32.totalorder %s23, 3
      %p358 = pnand %p356, %p357
      %p359 = pneg %p358
      // Predicated region
      $region9: #{tpu_custom_call.1} parent=5 // pred_check
        _
      $region10: #{tpu_custom_call.1} parent=5 // pred_check_branch
        %361 = sbr.rel (%p358) target = $region12
      $region11: #{tpu_custom_call.1} parent=5 // pred_region
        %s362 = ssub.s32 %s23, 1
        // Predicated region
        $region13: #{tpu_custom_call.1} parent=11 // pred_check
          %p363 = pneg %p70
        $region14: #{tpu_custom_call.1} parent=11 // pred_check_branch
          %365 = sbr.rel (%p363) target = $region16
        $region15: #{tpu_custom_call.1} parent=11 // pred_region
          _
        $region16: #{tpu_custom_call.1} parent=11 // pred_fallthru
          _
        // Predicated region
        $region17: #{tpu_custom_call.1} parent=11 // pred_check
          %p366 = pneg %p91
        $region18: #{tpu_custom_call.1} parent=11 // pred_check_branch
          %368 = sbr.rel (%p366) target = $region20
        $region19: #{tpu_custom_call.1} parent=11 // pred_region
          _
        $region20: #{tpu_custom_call.1} parent=11 // pred_fallthru
          _
        // Predicated region
        $region21: #{tpu_custom_call.1} parent=11 // pred_check
          %p369 = pneg %p112
        $region22: #{tpu_custom_call.1} parent=11 // pred_check_branch
          %371 = sbr.rel (%p369) target = $region24
        $region23: #{tpu_custom_call.1} parent=11 // pred_region
          _
        $region24: #{tpu_custom_call.1} parent=11 // pred_fallthru
          _
        // Predicated region
        $region25: #{tpu_custom_call.1} parent=11 // pred_check
          %p372 = pneg %p133
        $region26: #{tpu_custom_call.1} parent=11 // pred_check_branch
          %374 = sbr.rel (%p372) target = $region28
        $region27: #{tpu_custom_call.1} parent=11 // pred_region
          _
        $region28: #{tpu_custom_call.1} parent=11 // pred_fallthru
          _
        // Predicated region
        $region29: #{tpu_custom_call.1} parent=11 // pred_check
          %p375 = pneg %p154
        $region30: #{tpu_custom_call.1} parent=11 // pred_check_branch
          %377 = sbr.rel (%p375) target = $region32
        $region31: #{tpu_custom_call.1} parent=11 // pred_region
          _
        $region32: #{tpu_custom_call.1} parent=11 // pred_fallthru
          _
        // Predicated region
        $region33: #{tpu_custom_call.1} parent=11 // pred_check
          %p378 = pneg %p175
        $region34: #{tpu_custom_call.1} parent=11 // pred_check_branch
          %380 = sbr.rel (%p378) target = $region36
        $region35: #{tpu_custom_call.1} parent=11 // pred_region
          _
        $region36: #{tpu_custom_call.1} parent=11 // pred_fallthru
          _
        // Predicated region
        $region37: #{tpu_custom_call.1} parent=11 // pred_check
          %p381 = pneg %p196
        $region38: #{tpu_custom_call.1} parent=11 // pred_check_branch
          %383 = sbr.rel (%p381) target = $region40
        $region39: #{tpu_custom_call.1} parent=11 // pred_region
          _
        $region40: #{tpu_custom_call.1} parent=11 // pred_fallthru
          _
        // Predicated region
        $region41: #{tpu_custom_call.1} parent=11 // pred_check
          %p384 = pneg %p217
        $region42: #{tpu_custom_call.1} parent=11 // pred_check_branch
          %386 = sbr.rel (%p384) target = $region44
        $region43: #{tpu_custom_call.1} parent=11 // pred_region
          _
        $region44: #{tpu_custom_call.1} parent=11 // pred_fallthru
          _
        // Predicated region
        $region45: #{tpu_custom_call.1} parent=11 // pred_check
          %p387 = pneg %p238
        $region46: #{tpu_custom_call.1} parent=11 // pred_check_branch
          %389 = sbr.rel (%p387) target = $region48
        $region47: #{tpu_custom_call.1} parent=11 // pred_region
          _
        $region48: #{tpu_custom_call.1} parent=11 // pred_fallthru
          _
        // Predicated region
        $region49: #{tpu_custom_call.1} parent=11 // pred_check
          %p390 = pneg %p259
        $region50: #{tpu_custom_call.1} parent=11 // pred_check_branch
          %392 = sbr.rel (%p390) target = $region52
        $region51: #{tpu_custom_call.1} parent=11 // pred_region
          _
        $region52: #{tpu_custom_call.1} parent=11 // pred_fallthru
          _
        // Predicated region
        $region53: #{tpu_custom_call.1} parent=11 // pred_check
          %p393 = pneg %p280
        $region54: #{tpu_custom_call.1} parent=11 // pred_check_branch
          %395 = sbr.rel (%p393) target = $region56
        $region55: #{tpu_custom_call.1} parent=11 // pred_region
          _
        $region56: #{tpu_custom_call.1} parent=11 // pred_fallthru
          _
        // Predicated region
        $region57: #{tpu_custom_call.1} parent=11 // pred_check
          %p396 = pneg %p301
        $region58: #{tpu_custom_call.1} parent=11 // pred_check_branch
          %398 = sbr.rel (%p396) target = $region60
        $region59: #{tpu_custom_call.1} parent=11 // pred_region
          _
        $region60: #{tpu_custom_call.1} parent=11 // pred_fallthru
          _
        // Predicated region
        $region61: #{tpu_custom_call.1} parent=11 // pred_check
          %p399 = pneg %p322
        $region62: #{tpu_custom_call.1} parent=11 // pred_check_branch
          %401 = sbr.rel (%p399) target = $region64
        $region63: #{tpu_custom_call.1} parent=11 // pred_region
          _
        $region64: #{tpu_custom_call.1} parent=11 // pred_fallthru
          _
      $region12: #{tpu_custom_call.1} parent=5 // pred_fallthru
        _
      %p402 = scmp.lt.s32.totalorder %s23, 2
      // Predicated region
      $region65: #{tpu_custom_call.1} parent=5 // pred_check
        %p403 = pneg %p402
      $region66: #{tpu_custom_call.1} parent=5 // pred_check_branch
        %405 = sbr.rel (%p403) target = $region68
      $region67: #{tpu_custom_call.1} parent=5 // pred_region
        // Predicated region
        $region69: #{tpu_custom_call.1} parent=67 // pred_check
          %p406 = pneg %p43
        $region70: #{tpu_custom_call.1} parent=67 // pred_check_branch
          %408 = sbr.rel (%p406) target = $region72
        $region71: #{tpu_custom_call.1} parent=67 // pred_region
          %p409 = scmp.lt.s32.totalorder %s23, 1
          %s410 = scalar_select %p409, %s23, 1
          %s411 = smul.addr %s410, 8
          %s412 = scalar_lea.vmem %s0, %s411
        $region72: #{tpu_custom_call.1} parent=67 // pred_fallthru
          _
      $region68: #{tpu_custom_call.1} parent=5 // pred_fallthru
        _
      %p413 = scmp.le.s32.totalorder 1, %s23
      %p414 = scmp.lt.s32.totalorder %s23, 3
      %p415 = pnand %p413, %p414
      %p416 = pneg %p415
      // Predicated region
      $region73: #{tpu_custom_call.1} parent=5 // pred_check
        _
      $region74: #{tpu_custom_call.1} parent=5 // pred_check_branch
        %418 = sbr.rel (%p415) target = $region76
      $region75: #{tpu_custom_call.1} parent=5 // pred_region
        %s419 = ssub.s32 %s23, 1
        %p420 = scmp.lt.s32.totalorder %s28, 1
        %s421 = scalar_select %p420, %s28, 1
        %s422 = smul.addr %s421, 8
        %s423 = scalar_lea.vmem %s0, %s422
        %p424 = pneg %p49
        %p425 = pneg %p46
        %p426 = pneg %p70
        %p427 = pneg %p67
        %p428 = pneg %p91
        %p429 = pneg %p88
        %p430 = pneg %p112
        %p431 = pneg %p109
        %p432 = pneg %p133
        %p433 = pneg %p130
        %p434 = pneg %p154
        %p435 = pneg %p151
        %p436 = pneg %p175
        %p437 = pneg %p172
        %p438 = pneg %p196
        %p439 = pneg %p193
        %p440 = pneg %p217
        %p441 = pneg %p214
        %p442 = pneg %p238
        %p443 = pneg %p235
        %p444 = pneg %p259
        %p445 = pneg %p256
        %p446 = pneg %p280
        %p447 = pneg %p277
        %p448 = pneg %p301
        %p449 = pneg %p298
        %p450 = pneg %p322
        %p451 = pneg %p319
        %p452 = pneg %p348
        %p453 = pneg %p345
        %s454 = sand.u32 %s335, 1
        %s455 = scalar_lea.sflag [#allocation7], %s454
        %s456 = sand.u32 %s335, 1
        %s457 = smul.addr %s456, 8
        %s458 = scalar_lea.vmem [#allocation6], %s457
        %p459 = scmp.lt.s32.totalorder %s28, 1
        %s460 = scalar_select %p459, %s28, 1
        %s461 = smul.addr %s460, 8
        %s462 = scalar_lea.vmem %s0, %s461
        %v463 = vld [vmem:[%s462] sm:$0xff]
        %v464 = vld [vmem:[%s2] sm:$0x1]
        %v465 = vld [vmem:[%s3] sm:$0x1]
        %vm466 = vcmask 261120
        %v467 = vsel %vm466, %v463, 0.0
        %468 = vadd.xlane.f32.xlu0 %v467
        %v469 = vpop.xlane.xlu0 %468
        %v470 = vrcp.pop 32.0
        %v471 = vmul.f32 32.0, %v470
        %v472 = vsub.f32 1.0, %v471
        %v473 = vmul.f32 %v470, %v472
        %v474 = vadd.f32 %v470, %v473
        %vm475 = vweird.f32 %v470
        %v476 = vsel %vm475, %v470, %v474
        %v477 = vmul.f32 %v469, %v476
        %v478 = vsub.f32 %v463, %v477
        %v479 = vmul.f32 %v478, %v478
        %v480 = vsel %vm466, %v479, 0.0
        %481 = vadd.xlane.f32.xlu0 %v480
        %v482 = vpop.xlane.xlu0 %481
        %v483 = vmul.f32 %v482, %v476
        %v484 = vadd.f32 %v483, 1e-05
        %v485 = vrsqrt.pop %v484
        %v486 = vmul.f32 %v485, %v484
        %v487 = vmul.f32 %v486, %v485
        %v488 = vmul.f32 0.5, %v487
        %v489 = vsub.f32 1.5, %v488
        %v490 = vmul.f32 %v485, %v489
        %vm491 = vweird.f32 %v484
        %vm492 = vweird.f32 %v485
        %vm493 = vmor %vm491, %vm492
        %v494 = vsel %vm493, %v485, %v490
        %v495 = vmul.f32 %v478, %v494
        %v497 = vperm.slane %v464, 0
        %v499 = vmul.f32 %v495, %v497
        %v501 = vperm.slane %v465, 0
        %v503 = vadd.f32 %v499, %v501
        %v504 = vld [vmem:[%s4] sm:$0xff]
        %v505 = vld [vmem:[%s4 + $0x8] sm:$0xff]
        %v506 = vld [vmem:[%s4 + $0x10] sm:$0xff]
        %v507 = vld [vmem:[%s4 + $0x18] sm:$0xff]
        %v508 = vld [vmem:[%s5] sm:$0x1]
        %v510 = vperm.slane %v508, 0
        %v513 = vsel %vm466, %v503, 0
        %515 = vmatpush.msra.mxu0 0.0
        %516 = vmatpush.msra.mxu0 0.0
        %517 = vmatpush.msra.mxu0 0.0
        %518 = vmatpush.msra.mxu0 0.0
        %519 = vmatpush.msra.mxu0 0.0
        %520 = vmatpush.msra.mxu0 0.0
        %521 = vmatpush.msra.mxu0 0.0
        %522 = vmatpush.msra.mxu0 0.0
        %523 = vmatpush.msra.mxu0 0.0
        %524 = vmatpush.msra.mxu0 0.0
        %525 = vmatpush.msra.mxu0 0.0
        %526 = vmatpush.msra.mxu0 0.0
        %527 = vmatpush.msra.mxu0 %v507
        %528 = vmatpush.msra.mxu0 %v506
        %529 = vmatpush.msra.mxu0 %v505
        %530 = vmatpush.msra.mxu0 %v504
        %531 = vmatmul.f32.gmra.mxu0 %v513
        %v532 = vpop.f32.mrf.mxu0
        %v533 = vadd.f32 %v510, %v532
        %534 = vdwg.mxu0
        %vm535 = vcmask 64512
        %536 = vst.msk [vmem:[#allocation2] sm:$0xff] %vm535, %v533
        %538 = vrot.lane.b32.xlu0 %v533, 96
        %v539 = vpop.permute.xlu0 %538
        %541 = vst.msk [vmem:[#allocation3] sm:$0xff] %vm535, %v539
        %542 = vrot.lane.b32.xlu0 %v533, 64
        %v543 = vpop.permute.xlu0 %542
        %545 = vst.msk [vmem:[#allocation4] sm:$0xff] %vm535, %v543
        %546 = vrot.lane.b32.xlu0 %v533, 120
        %v547 = vpop.permute.xlu0 %546
        %s549 = scalar_lea.vmem [#allocation2], 8
        %550 = vst.msk [vmem:[%s549] sm:$0xff] %vm535, %v547
        %551 = vrot.lane.b32.xlu0 %v533, 88
        %v552 = vpop.permute.xlu0 %551
        %s554 = scalar_lea.vmem [#allocation3], 8
        %555 = vst.msk [vmem:[%s554] sm:$0xff] %vm535, %v552
        %556 = vrot.lane.b32.xlu0 %v533, 56
        %v557 = vpop.permute.xlu0 %556
        %s559 = scalar_lea.vmem [#allocation4], 8
        %560 = vst.msk [vmem:[%s559] sm:$0xff] %vm535, %v557
        %561 = vrot.lane.b32.xlu0 %v533, 112
        %v562 = vpop.permute.xlu0 %561
        %s564 = scalar_lea.vmem [#allocation2], 16
        %565 = vst.msk [vmem:[%s564] sm:$0xff] %vm535, %v562
        %566 = vrot.lane.b32.xlu0 %v533, 80
        %v567 = vpop.permute.xlu0 %566
        %s569 = scalar_lea.vmem [#allocation3], 16
        %570 = vst.msk [vmem:[%s569] sm:$0xff] %vm535, %v567
        %571 = vrot.lane.b32.xlu0 %v533, 48
        %v572 = vpop.permute.xlu0 %571
        %s574 = scalar_lea.vmem [#allocation4], 16
        %575 = vst.msk [vmem:[%s574] sm:$0xff] %vm535, %v572
        %576 = vrot.lane.b32.xlu0 %v533, 104
        %v577 = vpop.permute.xlu0 %576
        %s579 = scalar_lea.vmem [#allocation2], 24
        %580 = vst.msk [vmem:[%s579] sm:$0xff] %vm535, %v577
        %581 = vrot.lane.b32.xlu0 %v533, 72
        %v582 = vpop.permute.xlu0 %581
        %s584 = scalar_lea.vmem [#allocation3], 24
        %585 = vst.msk [vmem:[%s584] sm:$0xff] %vm535, %v582
        %586 = vrot.lane.b32.xlu0 %v533, 40
        %v587 = vpop.permute.xlu0 %586
        %s589 = scalar_lea.vmem [#allocation4], 24
        %590 = vst.msk [vmem:[%s589] sm:$0xff] %vm535, %v587
        %v591 = vld [vmem:[#allocation2] sm:$0xff]
        %v592 = vld [vmem:[#allocation2 + $0x8] sm:$0xff]
        %v593 = vld [vmem:[#allocation2 + $0x10] sm:$0xff]
        %v594 = vld [vmem:[#allocation2 + $0x18] sm:$0xff]
        %v595 = vld [vmem:[#allocation3] sm:$0xff]
        %v596 = vld [vmem:[#allocation3 + $0x8] sm:$0xff]
        %v597 = vld [vmem:[#allocation3 + $0x10] sm:$0xff]
        %v598 = vld [vmem:[#allocation3 + $0x18] sm:$0xff]
        %v599 = vld [vmem:[#allocation4] sm:$0xff]
        %v600 = vld [vmem:[#allocation4 + $0x8] sm:$0xff]
        %v601 = vld [vmem:[#allocation4 + $0x10] sm:$0xff]
        %v602 = vld [vmem:[#allocation4 + $0x18] sm:$0xff]
        %v603 = vld [vmem:[%s1] sm:$0xff]
        %v605 = vsel %vm535, %v591, 0
        %v608 = vsel %vm535, %v595, 0
        %610 = vmatpush.xpose.msra.mxu0 0.0
        %611 = vmatpush.xpose.msra.mxu0 0.0
        %612 = vmatpush.xpose.msra.mxu0 0.0
        %613 = vmatpush.xpose.msra.mxu0 0.0
        %614 = vmatpush.xpose.msra.mxu0 0.0
        %615 = vmatpush.xpose.msra.mxu0 0.0
        %616 = vmatpush.xpose.msra.mxu0 0.0
        %617 = vmatpush.xpose.msra.mxu0 0.0
        %618 = vmatpush.xpose.msra.mxu0 0.0
        %619 = vmatpush.xpose.msra.mxu0 0.0
        %620 = vmatpush.xpose.msra.mxu0 0.0
        %621 = vmatpush.xpose.msra.mxu0 0.0
        %622 = vmatpush.xpose.msra.mxu0 0.0
        %623 = vmatpush.xpose.msra.mxu0 0.0
        %624 = vmatpush.xpose.msra.mxu0 0.0
        %625 = vmatpush.xpose.msra.mxu0 %v608
        %626 = vmatmul.f32.gmra.mxu0 %v605
        %v627 = vpop.f32.mrf.mxu0
        %v628 = vadd.f32 %v603, %v627
        %629 = vdwg.mxu0
        %v631 = vsel %vm535, %v592, 0
        %v634 = vsel %vm535, %v596, 0
        %636 = vmatpush.xpose.msra.mxu0 0.0
        %637 = vmatpush.xpose.msra.mxu0 0.0
        %638 = vmatpush.xpose.msra.mxu0 0.0
        %639 = vmatpush.xpose.msra.mxu0 0.0
        %640 = vmatpush.xpose.msra.mxu0 0.0
        %641 = vmatpush.xpose.msra.mxu0 0.0
        %642 = vmatpush.xpose.msra.mxu0 0.0
        %643 = vmatpush.xpose.msra.mxu0 0.0
        %644 = vmatpush.xpose.msra.mxu0 0.0
        %645 = vmatpush.xpose.msra.mxu0 0.0
        %646 = vmatpush.xpose.msra.mxu0 0.0
        %647 = vmatpush.xpose.msra.mxu0 0.0
        %648 = vmatpush.xpose.msra.mxu0 0.0
        %649 = vmatpush.xpose.msra.mxu0 0.0
        %650 = vmatpush.xpose.msra.mxu0 0.0
        %651 = vmatpush.xpose.msra.mxu0 %v634
        %652 = vmatmul.f32.gmra.mxu0 %v631
        %v653 = vpop.f32.mrf.mxu0
        %v654 = vadd.f32 %v603, %v653
        %655 = vdwg.mxu0
        %v657 = vsel %vm535, %v593, 0
        %v660 = vsel %vm535, %v597, 0
        %662 = vmatpush.xpose.msra.mxu0 0.0
        %663 = vmatpush.xpose.msra.mxu0 0.0
        %664 = vmatpush.xpose.msra.mxu0 0.0
        %665 = vmatpush.xpose.msra.mxu0 0.0
        %666 = vmatpush.xpose.msra.mxu0 0.0
        %667 = vmatpush.xpose.msra.mxu0 0.0
        %668 = vmatpush.xpose.msra.mxu0 0.0
        %669 = vmatpush.xpose.msra.mxu0 0.0
        %670 = vmatpush.xpose.msra.mxu0 0.0
        %671 = vmatpush.xpose.msra.mxu0 0.0
        %672 = vmatpush.xpose.msra.mxu0 0.0
        %673 = vmatpush.xpose.msra.mxu0 0.0
        %674 = vmatpush.xpose.msra.mxu0 0.0
        %675 = vmatpush.xpose.msra.mxu0 0.0
        %676 = vmatpush.xpose.msra.mxu0 0.0
        %677 = vmatpush.xpose.msra.mxu0 %v660
        %678 = vmatmul.f32.gmra.mxu0 %v657
        %v679 = vpop.f32.mrf.mxu0
        %v680 = vadd.f32 %v603, %v679
        %681 = vdwg.mxu0
        %v683 = vsel %vm535, %v594, 0
        %v686 = vsel %vm535, %v598, 0
        %688 = vmatpush.xpose.msra.mxu0 0.0
        %689 = vmatpush.xpose.msra.mxu0 0.0
        %690 = vmatpush.xpose.msra.mxu0 0.0
        %691 = vmatpush.xpose.msra.mxu0 0.0
        %692 = vmatpush.xpose.msra.mxu0 0.0
        %693 = vmatpush.xpose.msra.mxu0 0.0
        %694 = vmatpush.xpose.msra.mxu0 0.0
        %695 = vmatpush.xpose.msra.mxu0 0.0
        %696 = vmatpush.xpose.msra.mxu0 0.0
        %697 = vmatpush.xpose.msra.mxu0 0.0
        %698 = vmatpush.xpose.msra.mxu0 0.0
        %699 = vmatpush.xpose.msra.mxu0 0.0
        %700 = vmatpush.xpose.msra.mxu0 0.0
        %701 = vmatpush.xpose.msra.mxu0 0.0
        %702 = vmatpush.xpose.msra.mxu0 0.0
        %703 = vmatpush.xpose.msra.mxu0 %v686
        %704 = vmatmul.f32.gmra.mxu0 %v683
        %v705 = vpop.f32.mrf.mxu0
        %v706 = vadd.f32 %v603, %v705
        %707 = vdwg.mxu0
        %v708 = vsel %vm535, %v628, -inf
        %709 = vmax.xlane.f32.xlu0 %v708
        %v710 = vpop.xlane.xlu0 %709
        %v711 = vsel %vm535, %v654, -inf
        %712 = vmax.xlane.f32.xlu0 %v711
        %v713 = vpop.xlane.xlu0 %712
        %v714 = vsel %vm535, %v680, -inf
        %715 = vmax.xlane.f32.xlu0 %v714
        %v716 = vpop.xlane.xlu0 %715
        %v717 = vsel %vm535, %v706, -inf
        %718 = vmax.xlane.f32.xlu0 %v717
        %v719 = vpop.xlane.xlu0 %718
        %v720 = vsub.f32 %v628, %v710
        %v721 = vsub.f32 %v654, %v713
        %v722 = vsub.f32 %v680, %v716
        %v723 = vsub.f32 %v706, %v719
        %v724 = vmul.f32 %v720, 1.442695
        %v725 = vpow.pop %v724
        %v726 = vmul.f32 %v721, 1.442695
        %v727 = vpow.pop %v726
        %v728 = vmul.f32 %v722, 1.442695
        %v729 = vpow.pop %v728
        %v730 = vmul.f32 %v723, 1.442695
        %v731 = vpow.pop %v730
        %v732 = vsel %vm535, %v725, 0.0
        %733 = vadd.xlane.f32.xlu0 %v732
        %v734 = vpop.xlane.xlu0 %733
        %v735 = vsel %vm535, %v727, 0.0
        %736 = vadd.xlane.f32.xlu0 %v735
        %v737 = vpop.xlane.xlu0 %736
        %v738 = vsel %vm535, %v729, 0.0
        %739 = vadd.xlane.f32.xlu0 %v738
        %v740 = vpop.xlane.xlu0 %739
        %v741 = vsel %vm535, %v731, 0.0
        %742 = vadd.xlane.f32.xlu0 %v741
        %v743 = vpop.xlane.xlu0 %742
        %v744 = vrcp.pop %v734
        %v745 = vmul.f32 %v734, %v744
        %v746 = vsub.f32 1.0, %v745
        %v747 = vmul.f32 %v744, %v746
        %v748 = vadd.f32 %v744, %v747
        %vm749 = vweird.f32 %v734
        %vm750 = vweird.f32 %v744
        %vm751 = vmor %vm749, %vm750
        %v752 = vsel %vm751, %v744, %v748
        %v753 = vand.u32 2147483647, %v734
        %vm754 = vcmp.eq.f32.partialorder %v753, 8.507059e+37
        %v755 = vand.u32 %v734, 2147483648
        %v756 = vor.u32 1.1754944e-38, %v755
        %v757 = vsel %vm754, %v756, %v752
        %v758 = vrcp.pop %v737
        %v759 = vmul.f32 %v737, %v758
        %v760 = vsub.f32 1.0, %v759
        %v761 = vmul.f32 %v758, %v760
        %v762 = vadd.f32 %v758, %v761
        %vm763 = vweird.f32 %v737
        %vm764 = vweird.f32 %v758
        %vm765 = vmor %vm763, %vm764
        %v766 = vsel %vm765, %v758, %v762
        %v767 = vand.u32 2147483647, %v737
        %vm768 = vcmp.eq.f32.partialorder %v767, 8.507059e+37
        %v769 = vand.u32 %v737, 2147483648
        %v770 = vor.u32 1.1754944e-38, %v769
        %v771 = vsel %vm768, %v770, %v766
        %v772 = vrcp.pop %v740
        %v773 = vmul.f32 %v740, %v772
        %v774 = vsub.f32 1.0, %v773
        %v775 = vmul.f32 %v772, %v774
        %v776 = vadd.f32 %v772, %v775
        %vm777 = vweird.f32 %v740
        %vm778 = vweird.f32 %v772
        %vm779 = vmor %vm777, %vm778
        %v780 = vsel %vm779, %v772, %v776
        %v781 = vand.u32 2147483647, %v740
        %vm782 = vcmp.eq.f32.partialorder %v781, 8.507059e+37
        %v783 = vand.u32 %v740, 2147483648
        %v784 = vor.u32 1.1754944e-38, %v783
        %v785 = vsel %vm782, %v784, %v780
        %v786 = vrcp.pop %v743
        %v787 = vmul.f32 %v743, %v786
        %v788 = vsub.f32 1.0, %v787
        %v789 = vmul.f32 %v786, %v788
        %v790 = vadd.f32 %v786, %v789
        %vm791 = vweird.f32 %v743
        %vm792 = vweird.f32 %v786
        %vm793 = vmor %vm791, %vm792
        %v794 = vsel %vm793, %v786, %v790
        %v795 = vand.u32 2147483647, %v743
        %vm796 = vcmp.eq.f32.partialorder %v795, 8.507059e+37
        %v797 = vand.u32 %v743, 2147483648
        %v798 = vor.u32 1.1754944e-38, %v797
        %v799 = vsel %vm796, %v798, %v794
        %v800 = vmul.f32 %v725, %v757
        %v801 = vmul.f32 %v727, %v771
        %v802 = vmul.f32 %v729, %v785
        %v803 = vmul.f32 %v731, %v799
        %v805 = vsel %vm535, %v800, 0
        %807 = vmatpush.msra.mxu0 0.0
        %808 = vmatpush.msra.mxu0 0.0
        %809 = vmatpush.msra.mxu0 0.0
        %810 = vmatpush.msra.mxu0 0.0
        %811 = vmatpush.msra.mxu0 0.0
        %812 = vmatpush.msra.mxu0 0.0
        %813 = vmatpush.msra.mxu0 0.0
        %814 = vmatpush.msra.mxu0 0.0
        %815 = vmatpush.msra.mxu0 0.0
        %816 = vmatpush.msra.mxu0 0.0
        %817 = vmatpush.msra.mxu0 0.0
        %818 = vmatpush.msra.mxu0 0.0
        %819 = vmatpush.msra.mxu0 0.0
        %820 = vmatpush.msra.mxu0 0.0
        %821 = vmatpush.msra.mxu0 0.0
        %822 = vmatpush.msra.mxu0 %v599
        %823 = vmatmul.f32.gmra.mxu0 %v805
        %v824 = vpop.f32.mrf.mxu0
        %v825 = vadd.f32 0.0, %v824
        %826 = vdwg.mxu0
        %v828 = vsel %vm535, %v801, 0
        %830 = vmatpush.msra.mxu0 0.0
        %831 = vmatpush.msra.mxu0 0.0
        %832 = vmatpush.msra.mxu0 0.0
        %833 = vmatpush.msra.mxu0 0.0
        %834 = vmatpush.msra.mxu0 0.0
        %835 = vmatpush.msra.mxu0 0.0
        %836 = vmatpush.msra.mxu0 0.0
        %837 = vmatpush.msra.mxu0 0.0
        %838 = vmatpush.msra.mxu0 0.0
        %839 = vmatpush.msra.mxu0 0.0
        %840 = vmatpush.msra.mxu0 0.0
        %841 = vmatpush.msra.mxu0 0.0
        %842 = vmatpush.msra.mxu0 0.0
        %843 = vmatpush.msra.mxu0 0.0
        %844 = vmatpush.msra.mxu0 0.0
        %845 = vmatpush.msra.mxu0 %v600
        %846 = vmatmul.f32.gmra.mxu0 %v828
        %v847 = vpop.f32.mrf.mxu0
        %v848 = vadd.f32 0.0, %v847
        %849 = vdwg.mxu0
        %v851 = vsel %vm535, %v802, 0
        %853 = vmatpush.msra.mxu0 0.0
        %854 = vmatpush.msra.mxu0 0.0
        %855 = vmatpush.msra.mxu0 0.0
        %856 = vmatpush.msra.mxu0 0.0
        %857 = vmatpush.msra.mxu0 0.0
        %858 = vmatpush.msra.mxu0 0.0
        %859 = vmatpush.msra.mxu0 0.0
        %860 = vmatpush.msra.mxu0 0.0
        %861 = vmatpush.msra.mxu0 0.0
        %862 = vmatpush.msra.mxu0 0.0
        %863 = vmatpush.msra.mxu0 0.0
        %864 = vmatpush.msra.mxu0 0.0
        %865 = vmatpush.msra.mxu0 0.0
        %866 = vmatpush.msra.mxu0 0.0
        %867 = vmatpush.msra.mxu0 0.0
        %868 = vmatpush.msra.mxu0 %v601
        %869 = vmatmul.f32.gmra.mxu0 %v851
        %v870 = vpop.f32.mrf.mxu0
        %v871 = vadd.f32 0.0, %v870
        %872 = vdwg.mxu0
        %v874 = vsel %vm535, %v803, 0
        %876 = vmatpush.msra.mxu0 0.0
        %877 = vmatpush.msra.mxu0 0.0
        %878 = vmatpush.msra.mxu0 0.0
        %879 = vmatpush.msra.mxu0 0.0
        %880 = vmatpush.msra.mxu0 0.0
        %881 = vmatpush.msra.mxu0 0.0
        %882 = vmatpush.msra.mxu0 0.0
        %883 = vmatpush.msra.mxu0 0.0
        %884 = vmatpush.msra.mxu0 0.0
        %885 = vmatpush.msra.mxu0 0.0
        %886 = vmatpush.msra.mxu0 0.0
        %887 = vmatpush.msra.mxu0 0.0
        %888 = vmatpush.msra.mxu0 0.0
        %889 = vmatpush.msra.mxu0 0.0
        %890 = vmatpush.msra.mxu0 0.0
        %891 = vmatpush.msra.mxu0 %v602
        %892 = vmatmul.f32.gmra.mxu0 %v874
        %v893 = vpop.f32.mrf.mxu0
        %v894 = vadd.f32 0.0, %v893
        %895 = vdwg.mxu0
        %896 = vst.msk [vmem:[#allocation5] sm:$0xff] %vm535, %v825
        %898 = vrot.lane.b32.xlu0 %v848, 8
        %v899 = vpop.permute.xlu0 %898
        %vm901 = vcmask 130112
        %902 = vst.msk [vmem:[#allocation5] sm:$0xff] %vm901, %v899
        %904 = vrot.lane.b32.xlu0 %v871, 16
        %v905 = vpop.permute.xlu0 %904
        %vm907 = vcmask 195712
        %908 = vst.msk [vmem:[#allocation5] sm:$0xff] %vm907, %v905
        %910 = vrot.lane.b32.xlu0 %v894, 24
        %v911 = vpop.permute.xlu0 %910
        %vm913 = vcmask 261312
        %914 = vst.msk [vmem:[#allocation5] sm:$0xff] %vm913, %v911
        %v915 = vld [vmem:[#allocation5] sm:$0xff]
        %v916 = vld [vmem:[%s6] sm:$0xff]
        %v917 = vld [vmem:[%s6 + $0x8] sm:$0xff]
        %v918 = vld [vmem:[%s6 + $0x10] sm:$0xff]
        %v919 = vld [vmem:[%s6 + $0x18] sm:$0xff]
        %v921 = vsel %vm466, %v915, 0
        %923 = vmatpush.msra.mxu0 0.0
        %924 = vmatpush.msra.mxu0 0.0
        %925 = vmatpush.msra.mxu0 0.0
        %926 = vmatpush.msra.mxu0 0.0
        %927 = vmatpush.msra.mxu0 0.0
        %928 = vmatpush.msra.mxu0 0.0
        %929 = vmatpush.msra.mxu0 0.0
        %930 = vmatpush.msra.mxu0 0.0
        %931 = vmatpush.msra.mxu0 0.0
        %932 = vmatpush.msra.mxu0 0.0
        %933 = vmatpush.msra.mxu0 0.0
        %934 = vmatpush.msra.mxu0 0.0
        %935 = vmatpush.msra.mxu0 %v919
        %936 = vmatpush.msra.mxu0 %v918
        %937 = vmatpush.msra.mxu0 %v917
        %938 = vmatpush.msra.mxu0 %v916
        %939 = vmatmul.f32.gmra.mxu0 %v921
        %v940 = vpop.f32.mrf.mxu0
        %v941 = vadd.f32 0.0, %v940
        %942 = vdwg.mxu0
        %v943 = vadd.f32 %v463, %v941
        %v944 = vld [vmem:[%s7] sm:$0x1]
        %v946 = vperm.slane %v944, 0
        %v948 = vadd.f32 %v943, %v946
        %v949 = vld [vmem:[%s8] sm:$0x1]
        %v950 = vld [vmem:[%s9] sm:$0x1]
        %v951 = vsel %vm466, %v948, 0.0
        %952 = vadd.xlane.f32.xlu0 %v951
        %v953 = vpop.xlane.xlu0 %952
        %v954 = vmul.f32 %v953, %v476
        %v955 = vsub.f32 %v948, %v954
        %v956 = vmul.f32 %v955, %v955
        %v957 = vsel %vm466, %v956, 0.0
        %958 = vadd.xlane.f32.xlu0 %v957
        %v959 = vpop.xlane.xlu0 %958
        %v960 = vmul.f32 %v959, %v476
        %v961 = vadd.f32 %v960, 1e-05
        %v962 = vrsqrt.pop %v961
        %v963 = vmul.f32 %v962, %v961
        %v964 = vmul.f32 %v963, %v962
        %v965 = vmul.f32 0.5, %v964
        %v966 = vsub.f32 1.5, %v965
        %v967 = vmul.f32 %v962, %v966
        %vm968 = vweird.f32 %v961
        %vm969 = vweird.f32 %v962
        %vm970 = vmor %vm968, %vm969
        %v971 = vsel %vm970, %v962, %v967
        %v972 = vmul.f32 %v955, %v971
        %v974 = vperm.slane %v949, 0
        %v976 = vmul.f32 %v972, %v974
        %v978 = vperm.slane %v950, 0
        %v980 = vadd.f32 %v976, %v978
        %v981 = vld [vmem:[%s10] sm:$0xff]
        %v982 = vld [vmem:[%s10 + $0x8] sm:$0xff]
        %v983 = vld [vmem:[%s10 + $0x10] sm:$0xff]
        %v984 = vld [vmem:[%s10 + $0x18] sm:$0xff]
        %v985 = vld [vmem:[%s11] sm:$0x1]
        %v987 = vperm.slane %v985, 0
        %v990 = vsel %vm466, %v980, 0
        %992 = vmatpush.msra.mxu0 0.0
        %993 = vmatpush.msra.mxu0 0.0
        %994 = vmatpush.msra.mxu0 0.0
        %995 = vmatpush.msra.mxu0 0.0
        %996 = vmatpush.msra.mxu0 0.0
        %997 = vmatpush.msra.mxu0 0.0
        %998 = vmatpush.msra.mxu0 0.0
        %999 = vmatpush.msra.mxu0 0.0
        %1000 = vmatpush.msra.mxu0 0.0
        %1001 = vmatpush.msra.mxu0 0.0
        %1002 = vmatpush.msra.mxu0 0.0
        %1003 = vmatpush.msra.mxu0 0.0
        %1004 = vmatpush.msra.mxu0 %v984
        %1005 = vmatpush.msra.mxu0 %v983
        %1006 = vmatpush.msra.mxu0 %v982
        %1007 = vmatpush.msra.mxu0 %v981
        %1008 = vmatmul.f32.gmra.mxu0 %v990
        %v1009 = vpop.f32.mrf.mxu0
        %v1010 = vadd.f32 %v987, %v1009
        %1011 = vdwg.mxu0
        %v1012 = vmul.f32 %v1010, 0.5
        %v1013 = vmul.f32 %v1010, 0.70710677
        %v1014 = vmul.f32 %v1013, %v1013
        %v1015 = vmin.f32 16.0, %v1014
        %v1016 = vmul.f32 %v1015, 2.1237322e-06
        %v1017 = vadd.f32 %v1016, 0.00028619796
        %v1018 = vmul.f32 %v1015, %v1017
        %v1019 = vadd.f32 %v1018, 0.0036580483
        %v1020 = vmul.f32 %v1015, %v1019
        %v1021 = vadd.f32 %v1020, 0.05243302
        %v1022 = vmul.f32 %v1015, %v1021
        %v1023 = vadd.f32 %v1022, 0.18741608
        %v1024 = vmul.f32 %v1015, %v1023
        %v1025 = vadd.f32 %v1024, 1.1283791
        %v1026 = vmul.f32 %v1013, %v1025
        %v1027 = vmul.f32 %v1015, 3.8918573e-05
        %v1028 = vadd.f32 %v1027, 0.001143296
        %v1029 = vmul.f32 %v1015, %v1028
        %v1030 = vadd.f32 %v1029, 0.014752088
        %v1031 = vmul.f32 %v1015, %v1030
        %v1032 = vadd.f32 %v1031, 0.112945676
        %v1033 = vmul.f32 %v1015, %v1032
        %v1034 = vadd.f32 %v1033, 0.4994258
        %v1035 = vmul.f32 %v1015, %v1034
        %v1036 = vadd.f32 %v1035, 1.0
        %v1037 = vrcp.pop %v1036
        %v1038 = vmul.f32 %v1036, %v1037
        %v1039 = vsub.f32 1.0, %v1038
        %v1040 = vmul.f32 %v1037, %v1039
        %v1041 = vadd.f32 %v1037, %v1040
        %vm1042 = vweird.f32 %v1036
        %vm1043 = vweird.f32 %v1037
        %vm1044 = vmor %vm1042, %vm1043
        %v1045 = vsel %vm1044, %v1037, %v1041
        %v1046 = vand.u32 2147483647, %v1036
        %vm1047 = vcmp.eq.f32.partialorder %v1046, 8.507059e+37
        %v1048 = vand.u32 %v1036, 2147483648
        %v1049 = vor.u32 1.1754944e-38, %v1048
        %v1050 = vsel %vm1047, %v1049, %v1045
        %v1051 = vmul.f32 %v1026, %v1050
        %v1052 = vmin.f32 %v1051, 1.0
        %v1053 = vmax.f32 %v1052, -1.0
        %v1054 = vadd.f32 %v1053, 1.0
        %v1055 = vmul.f32 %v1012, %v1054
        %v1056 = vld [vmem:[%s12] sm:$0xff]
        %v1057 = vld [vmem:[%s12 + $0x8] sm:$0xff]
        %v1058 = vld [vmem:[%s12 + $0x10] sm:$0xff]
        %v1059 = vld [vmem:[%s12 + $0x18] sm:$0xff]
        %v1060 = vld [vmem:[%s12 + $0x20] sm:$0xff]
        %v1061 = vld [vmem:[%s12 + $0x28] sm:$0xff]
        %v1062 = vld [vmem:[%s12 + $0x30] sm:$0xff]
        %v1063 = vld [vmem:[%s12 + $0x38] sm:$0xff]
        %v1064 = vld [vmem:[%s12 + $0x40] sm:$0xff]
        %v1065 = vld [vmem:[%s12 + $0x48] sm:$0xff]
        %v1066 = vld [vmem:[%s12 + $0x50] sm:$0xff]
        %v1067 = vld [vmem:[%s12 + $0x58] sm:$0xff]
        %v1068 = vld [vmem:[%s12 + $0x60] sm:$0xff]
        %v1069 = vld [vmem:[%s12 + $0x68] sm:$0xff]
        %v1070 = vld [vmem:[%s12 + $0x70] sm:$0xff]
        %v1071 = vld [vmem:[%s12 + $0x78] sm:$0xff]
        %v1072 = vld [vmem:[%s13] sm:$0x1]
        %v1074 = vperm.slane %v1072, 0
        %1076 = vmatpush.msra.mxu0 %v1071
        %1077 = vmatpush.msra.mxu0 %v1070
        %1078 = vmatpush.msra.mxu0 %v1069
        %1079 = vmatpush.msra.mxu0 %v1068
        %1080 = vmatpush.msra.mxu0 %v1067
        %1081 = vmatpush.msra.mxu0 %v1066
        %1082 = vmatpush.msra.mxu0 %v1065
        %1083 = vmatpush.msra.mxu0 %v1064
        %1084 = vmatpush.msra.mxu0 %v1063
        %1085 = vmatpush.msra.mxu0 %v1062
        %1086 = vmatpush.msra.mxu0 %v1061
        %1087 = vmatpush.msra.mxu0 %v1060
        %1088 = vmatpush.msra.mxu0 %v1059
        %1089 = vmatpush.msra.mxu0 %v1058
        %1090 = vmatpush.msra.mxu0 %v1057
        %1091 = vmatpush.msra.mxu0 %v1056
        %1092 = vmatmul.f32.gmra.mxu0 %v1055
        %v1093 = vpop.f32.mrf.mxu0
        %v1094 = vadd.f32 %v1074, %v1093
        %1095 = vdwg.mxu0
        %v1096 = vadd.f32 %v948, %v1094
        %1097 = vst.msk [vmem:[%s458] sm:$0xff] %vm466, %v1096
        %s1098 = sand.u32 %s335, 1
        %s1099 = scalar_lea.sflag [#allocation7], %s1098
        %s1100 = sand.u32 %s335, 1
        %s1101 = smul.addr %s1100, 8
        %s1102 = scalar_lea.vmem [#allocation6], %s1101
        // Predicated region
        $region77: #{tpu_custom_call.1} parent=75 // pred_check
          %p1103 = pneg %p345
        $region78: #{tpu_custom_call.1} parent=75 // pred_check_branch
          %1105 = sbr.rel (%p1103) target = $region80
        $region79: #{tpu_custom_call.1} parent=75 // pred_region
          %1107 = vsyncadd %s1099, 0
          %s1108 = smul.addr %s28, 8
          %s1109 = scalar_lea.hbm %s14, %s1108
          %s1111 = sshll.u32 %s1102, 4
          %s1112 = int_to_ptr.vmem [resolvable:$true] %s1111
          %s1113 = sshll.u32 %s1109, 4
          %s1114 = int_to_ptr.hbm [resolvable:$true] %s1113
          %1116 = dma.vmem_to_hbm [thread:$0]  %s1112, 128, %s1114, %s1099
        $region80: #{tpu_custom_call.1} parent=75 // pred_fallthru
          _
      $region76: #{tpu_custom_call.1} parent=5 // pred_fallthru
        _
      %p1117 = scmp.le.s32.totalorder 2, %s23
      // Predicated region
      $region81: #{tpu_custom_call.1} parent=5 // pred_check
        %p1118 = pneg %p1117
      $region82: #{tpu_custom_call.1} parent=5 // pred_check_branch
        %1120 = sbr.rel (%p1118) target = $region84
      $region83: #{tpu_custom_call.1} parent=5 // pred_region
        %s1121 = ssub.s32 %s23, 2
        // Predicated region
        $region85: #{tpu_custom_call.1} parent=83 // pred_check
          %p1122 = pneg %p351
        $region86: #{tpu_custom_call.1} parent=83 // pred_check_branch
          %1124 = sbr.rel (%p1122) target = $region88
        $region87: #{tpu_custom_call.1} parent=83 // pred_region
          %s1125 = sand.u32 %s336, 1
          %s1126 = scalar_lea.sflag [#allocation7], %s1125
          %s1127 = sand.u32 %s336, 1
          %s1128 = smul.addr %s1127, 8
          %s1129 = scalar_lea.vmem [#allocation6], %s1128
          %1131 = dma.done %s1126, 128
        $region88: #{tpu_custom_call.1} parent=83 // pred_fallthru
          _
      $region84: #{tpu_custom_call.1} parent=5 // pred_fallthru
        _
    $region6: #{tpu_custom_call.1} parent=1 // loop_footer
      %s27 = sadd.s32 1, %s23
    $region7: #{tpu_custom_call.1} parent=1 // loop_footer_branch
      %22 = sbr.rel target = $region3
    $region8: #{tpu_custom_call.1} parent=1 // loop_exit
      _
    %1132 = vsyncpa [#allocation7], 1
    %s1133 = scalar_lea.sflag [#allocation7], 1
    %1134 = vsyncpa %s1133, 1

</llo_original>
